<compile_context>
chip_gen: v6e
topology: v6e:2x2x1
jax: 0.10.0
libtpu: 0.0.40
codegen_flags: <defaults>
</compile_context>

<pallas_src>
import functools

import numpy as np

import jax
import jax.numpy as jnp
from jax.experimental import pallas as pl
from jax.experimental.pallas import tpu as pltpu


# ----------------------------------------------------------------------------
# Fused Pallas kernel: leaf init + all levels + readout in one call
# ----------------------------------------------------------------------------
def _fused_tree_lstm_kernel(x_ref, w_iou_ref, b_iou_ref,
                            u_ref, u_b_ref,
                            out_w_ref, out_b_ref,
                            sel_l_ref, sel_r_ref,
                            out_ref, hc_ref,
                            *, hidden, l_max, leaf_tile, n_leaf_tiles,
                            root_row0, batch_pad):
    H = hidden
    level = pl.program_id(0)

    # ---- level 0: zero state, tiled leaf apply ------------------------------
    #      iou = x @ W_iou + b ; c = i*u ; h = o*tanh(c)
    @pl.when(level == 0)
    def _init():
        hc_ref[...] = jnp.zeros_like(hc_ref)

        def leaf_apply(r0):
            iou = jnp.dot(x_ref[pl.ds(r0, leaf_tile), :], w_iou_ref[...],
                          preferred_element_type=jnp.float32) + b_iou_ref[...]
            i0 = jax.nn.sigmoid(iou[:, 0:H])
            o0 = jax.nn.sigmoid(iou[:, H:2 * H])
            u0 = jnp.tanh(iou[:, 2 * H:3 * H])
            c0 = i0 * u0
            h0 = o0 * jnp.tanh(c0)
            hc_ref[pl.ds(r0, leaf_tile), :] = jnp.concatenate([h0, c0], axis=-1)

        if n_leaf_tiles == 1:                     # static Python branch
            leaf_apply(0)
        else:
            def body(t, carry):
                leaf_apply(pl.multiple_of(t * leaf_tile, 8))
                return carry
            jax.lax.fori_loop(0, n_leaf_tiles, body, 0)

    # ---- gather children: contiguous slice of the previous block + constant
    #      even/odd selector matmuls (h in bf16, c in f32). ------------------
    child_row0 = pl.multiple_of(
        jnp.where(level == 0, 0, (level + 1) * l_max), 8)
    child = hc_ref[pl.ds(child_row0, 2 * l_max), :]        # (2*l_max, 2H) f32
    ch_h = child[:, 0:H].astype(jnp.bfloat16)
    ch_c = child[:, H:2 * H]
    sel_l = sel_l_ref[...]                                  # (l_max, 2*l_max) bf16
    sel_r = sel_r_ref[...]
    h_l = jnp.dot(sel_l, ch_h, preferred_element_type=jnp.float32)
    h_r = jnp.dot(sel_r, ch_h, preferred_element_type=jnp.float32)
    c_l = jnp.dot(sel_l.astype(jnp.float32), ch_c,
                  preferred_element_type=jnp.float32)
    c_r = jnp.dot(sel_r.astype(jnp.float32), ch_c,
                  preferred_element_type=jnp.float32)

    # ---- one fused K=2H gate matmul: [f_left | f_right | i | o | u] --------
    h_cat = jnp.concatenate([h_l, h_r], axis=-1).astype(jnp.bfloat16)
    gates = jnp.dot(h_cat, u_ref[...],
                    preferred_element_type=jnp.float32) + u_b_ref[...]
    f_l = jax.nn.sigmoid(gates[:, 0:H])
    f_r = jax.nn.sigmoid(gates[:, H:2 * H])
    i_g = jax.nn.sigmoid(gates[:, 2 * H:3 * H])
    o_g = jax.nn.sigmoid(gates[:, 3 * H:4 * H])
    u_g = jnp.tanh(gates[:, 4 * H:5 * H])
    c_new = i_g * u_g + f_l * c_l + f_r * c_r
    h_new = o_g * jnp.tanh(c_new)

    # ---- scatter: level `level` owns the contiguous block at (level+2)*l_max
    out_row0 = pl.multiple_of((level + 2) * l_max, 8)
    hc_ref[pl.ds(out_row0, l_max), :] = jnp.concatenate([h_new, c_new], axis=-1)

    # ---- last level: contiguous root slice + output linear + log_softmax ----
    @pl.when(level == pl.num_programs(0) - 1)
    def _readout():
        h_root = hc_ref[root_row0:root_row0 + batch_pad, 0:H]
        logits = jnp.dot(h_root.astype(jnp.bfloat16), out_w_ref[...],
                         preferred_element_type=jnp.float32) + out_b_ref[...]
        m = jnp.max(logits, axis=-1, keepdims=True)
        z = logits - m
        out_ref[...] = z - jnp.log(jnp.sum(jnp.exp(z), axis=-1, keepdims=True))


# ----------------------------------------------------------------------------
# Forward pass wrapper (single pallas_call; only embedding gather stays in XLA)
# ----------------------------------------------------------------------------
def tree_lstm_forward(params, leaf_labels, g):
    H = params["w_iou_t"].shape[0]
    out_size = params["out_w_t"].shape[1]
    l_max = g["l_max"]
    num_levels = g["num_levels"]
    n_state = g["n_state"]
    n_leaf_rows = g["n_leaf_rows"]
    batch = g["roots"].shape[0]
    batch_pad = ((batch + 7) // 8) * 8
    root_row0 = (num_levels + 1) * l_max

    # leaf embeddings (host-side gather), bf16 (only feeds a bf16 MXU matmul)
    x = params["emb"][leaf_labels].astype(jnp.bfloat16)
    x = jnp.pad(x, ((0, n_leaf_rows - x.shape[0]), (0, 0)))

    # fused gate weights: columns = [U_f (2H) | U_iou (3H)]; bf16 MXU operands.
    u_cat_t = jnp.concatenate([params["u_f_w_t"], params["u_iou_t"]], axis=1)
    u_cat_b = jnp.concatenate([params["u_f_b"], params["b_iou"]], axis=1)
    u_cat_bf = u_cat_t.astype(jnp.bfloat16)
    w_iou_bf = params["w_iou_t"].astype(jnp.bfloat16)
    out_w_bf = params["out_w_t"].astype(jnp.bfloat16)

    # leaf-apply tiling (bounds vreg live ranges for large forests)
    leaf_tile = n_leaf_rows
    while (leaf_tile > 512 and leaf_tile % 2 == 0
           and (leaf_tile // 2) % 8 == 0):
        leaf_tile //= 2
    n_leaf_tiles = n_leaf_rows // leaf_tile

    kernel = functools.partial(_fused_tree_lstm_kernel,
                               hidden=H, l_max=l_max,
                               leaf_tile=leaf_tile, n_leaf_tiles=n_leaf_tiles,
                               root_row0=root_row0, batch_pad=batch_pad)

    def const_spec(shape):
        nd = len(shape)
        return pl.BlockSpec(shape, lambda l, _nd=nd: (0,) * _nd)

    out = pl.pallas_call(
        kernel,
        grid=(num_levels,),
        in_specs=[
            const_spec((n_leaf_rows, H)),        # x (leaf embeddings, bf16)
            const_spec((H, 3 * H)),              # W_iou^T            (bf16)
            const_spec((1, 3 * H)),              # b_iou
            const_spec((2 * H, 5 * H)),          # fused [U_f | U_iou]^T (bf16)
            const_spec((1, 5 * H)),              # fused gate bias
            const_spec((H, out_size)),           # out W^T            (bf16)
            const_spec((1, out_size)),           # out b
            const_spec((l_max, 2 * l_max)),      # even-child selector (bf16)
            const_spec((l_max, 2 * l_max)),      # odd-child selector  (bf16)
        ],
        out_specs=pl.BlockSpec((batch_pad, out_size), lambda l: (0, 0)),
        out_shape=jax.ShapeDtypeStruct((batch_pad, out_size), jnp.float32),
        scratch_shapes=[pltpu.VMEM((n_state, 2 * H), jnp.float32)],
        compiler_params=pltpu.CompilerParams(
            dimension_semantics=("arbitrary",),
            vmem_limit_bytes=32 * 1024 * 1024),
    )(x, w_iou_bf, params["b_iou"], u_cat_bf, u_cat_b,
      out_w_bf, params["out_b"], g["sel_l"], g["sel_r"])
    return out[:batch]


# ----------------------------------------------------------------------------
# Pure-JAX f32 reference (uses explicit child-index tables, same row layout)
# ----------------------------------------------------------------------------
def tree_lstm_ref(params, leaf_labels, g):
    H = params["w_iou_t"].shape[0]
    x = params["emb"][leaf_labels]
    iou = x @ params["w_iou_t"] + params["b_iou"]
    i0 = jax.nn.sigmoid(iou[:, :H])
    o0 = jax.nn.sigmoid(iou[:, H:2 * H])
    u0 = jnp.tanh(iou[:, 2 * H:])
    c0 = i0 * u0
    h0 = o0 * jnp.tanh(c0)
    hs = jnp.zeros((g["n_state"], H), jnp.float32).at[:x.shape[0]].set(h0)
    cs = jnp.zeros((g["n_state"], H), jnp.float32).at[:x.shape[0]].set(c0)
    for lvl in range(g["num_levels"]):
        li = g["left"][lvl]
        ri = g["right"][lvl]
        h_cat = jnp.concatenate([hs[li], hs[ri]], axis=-1)
        f = jax.nn.sigmoid(h_cat @ params["u_f_w_t"] + params["u_f_b"])
        c_red = f[:, :H] * cs[li] + f[:, H:] * cs[ri]
        iou_n = h_cat @ params["u_iou_t"] + params["b_iou"]
        i2 = jax.nn.sigmoid(iou_n[:, :H])
        o2 = jax.nn.sigmoid(iou_n[:, H:2 * H])
        u2 = jnp.tanh(iou_n[:, 2 * H:])
        c_n = i2 * u2 + c_red
        h_n = o2 * jnp.tanh(c_n)
        rows = (lvl + 2) * g["l_max"] + jnp.arange(g["l_max"])
        hs = hs.at[rows].set(h_n)
        cs = cs.at[rows].set(c_n)
    logits = hs[g["roots"]] @ params["out_w_t"] + params["out_b"]
    return jax.nn.log_softmax(logits, axis=-1)


# ----------------------------------------------------------------------------
# Parameter init and host-side graph preprocessing
# ----------------------------------------------------------------------------
def init_params(key, hidden, in_size, out_size):
    ks = jax.random.split(key, 6)
    s = 0.1
    emb = jax.random.normal(ks[0], (in_size, hidden), jnp.float32) * s
    w_iou = jax.random.normal(ks[1], (3 * hidden, hidden), jnp.float32) * s
    u_iou = jax.random.normal(ks[2], (3 * hidden, 2 * hidden), jnp.float32) * s
    b_iou = jnp.zeros((1, 3 * hidden), jnp.float32)
    u_f_w = jax.random.normal(ks[3], (2 * hidden, 2 * hidden), jnp.float32) * s
    u_f_b = jax.random.normal(ks[4], (2 * hidden,), jnp.float32) * s
    out_w = jax.random.normal(ks[5], (out_size, hidden), jnp.float32) * s
    out_b = jnp.zeros((out_size,), jnp.float32)
    return dict(
        emb=emb,
        w_iou_t=w_iou.T, u_iou_t=u_iou.T, b_iou=b_iou,
        u_f_w_t=u_f_w.T, u_f_b=u_f_b.reshape(1, -1),
        out_w_t=out_w.T, out_b=out_b.reshape(1, -1),
    )


def build_forest(batch, n_leaves):
    """Batch of complete binary trees renumbered so that the state slab is
    [leaf block (2*l_max rows) | level-0 block (l_max) | level-1 block | ...]
    with each level's children sitting at rows (2q, 2q+1) of the PREVIOUS
    block.  The kernel then needs no index tables: child gather = contiguous
    slice + constant even/odd selectors, scatter = contiguous block store,
    roots = contiguous rows of the last block."""
    assert n_leaves >= 2 and (n_leaves & (n_leaves - 1)) == 0
    num_levels = n_leaves.bit_length() - 1
    widths = [batch * (n_leaves >> (lvl + 1)) for lvl in range(num_levels)]
    l_max = max(((widths[0] + 7) // 8) * 8, 8)
    n_leaf_total = batch * n_leaves
    n_leaf_rows = 2 * l_max                       # leaf block (>= n_leaf_total)
    n_state = (num_levels + 2) * l_max

    # Child-index tables (reference only) + renumbering bookkeeping.
    left = np.zeros((num_levels, l_max), np.int32)
    right = np.zeros((num_levels, l_max), np.int32)
    frontier = [[t * n_leaves + j for j in range(n_leaves)] for t in range(batch)]
    for lvl in range(num_levels):
        slot = 0
        for t in range(batch):
            cur, nxt = frontier[t], []
            for k in range(0, len(cur), 2):
                nid = (lvl + 2) * l_max + slot
                left[lvl, slot] = cur[k]
                right[lvl, slot] = cur[k + 1]
                nxt.append(nid)
                slot += 1
            frontier[t] = nxt
        assert slot == widths[lvl] <= l_max
        # pairing invariant used by the kernel: left child row = child_base+2q
        assert all(left[lvl, q] % (2 * l_max if lvl == 0 else l_max)
                   in (2 * q, 2 * q) for q in range(slot))
    roots = np.array([frontier[t][0] for t in range(batch)], np.int32)

    # Constant even/odd child selectors (0/1 exact in bf16).
    sel_l = np.zeros((l_max, 2 * l_max), np.float32)
    sel_r = np.zeros((l_max, 2 * l_max), np.float32)
    sel_l[np.arange(l_max), 2 * np.arange(l_max)] = 1.0
    sel_r[np.arange(l_max), 2 * np.arange(l_max) + 1] = 1.0

    return dict(left=jnp.asarray(left), right=jnp.asarray(right),
                roots=jnp.asarray(roots),
                sel_l=jnp.asarray(sel_l, jnp.bfloat16),
                sel_r=jnp.asarray(sel_r, jnp.bfloat16),
                n_leaf_total=n_leaf_total, n_leaf_rows=n_leaf_rows,
                l_max=l_max, num_levels=num_levels, n_state=n_state)


# ----------------------------------------------------------------------------
if __name__ == "__main__":
    HIDDEN, IN_SIZE, OUT_SIZE = 32, 16, 8
    BATCH, N_LEAVES = 4, 8

    key = jax.random.PRNGKey(0)
    k_params, k_labels = jax.random.split(key)

    params = init_params(k_params, HIDDEN, IN_SIZE, OUT_SIZE)
    graph = build_forest(BATCH, N_LEAVES)
    leaf_labels = jax.random.randint(k_labels, (graph["n_leaf_total"],),
                                     0, IN_SIZE, jnp.int32)

    out = tree_lstm_forward(params, leaf_labels, graph)
    jax.block_until_ready(out)

    ref = tree_lstm_ref(params, leaf_labels, graph)
    assert out.shape == (BATCH, OUT_SIZE)
    assert bool(jnp.all(jnp.isfinite(out)))
    assert bool(jnp.allclose(out, ref, atol=2e-2, rtol=2e-2))

    print("KERNEL_OK")
</pallas_src>

<mosaic_0001>
module attributes {stable_mosaic.version = 11 : i64} {
  func.func @_fused_tree_lstm_kernel(%arg0: i32, %arg1: memref<32x32xbf16, #tpu.memory_space<vmem>>, %arg2: memref<32x96xbf16, #tpu.memory_space<vmem>>, %arg3: memref<1x96xf32, #tpu.memory_space<vmem>>, %arg4: memref<64x160xbf16, #tpu.memory_space<vmem>>, %arg5: memref<1x160xf32, #tpu.memory_space<vmem>>, %arg6: memref<32x8xbf16, #tpu.memory_space<vmem>>, %arg7: memref<1x8xf32, #tpu.memory_space<vmem>>, %arg8: memref<16x32xbf16, #tpu.memory_space<vmem>>, %arg9: memref<16x32xbf16, #tpu.memory_space<vmem>>, %arg10: memref<8x8xf32, #tpu.memory_space<vmem>>, %arg11: memref<80x64xf32, #tpu.memory_space<vmem>>) attributes {dimension_semantics = [#tpu.dimension_semantics<arbitrary>], iteration_bounds = array<i64: 3>, scalar_prefetch = 0 : i64, scratch_operands = 1 : i64, tpu.core_type = #tpu.core_type<tc>, window_params = [{pipeline_mode = #tpu.pipeline_mode<synchronous>, transform_indices = @transform_0, window_bounds = array<i64: 32, 32>}, {pipeline_mode = #tpu.pipeline_mode<synchronous>, transform_indices = @transform_1, window_bounds = array<i64: 32, 96>}, {pipeline_mode = #tpu.pipeline_mode<synchronous>, transform_indices = @transform_2, window_bounds = array<i64: 1, 96>}, {pipeline_mode = #tpu.pipeline_mode<synchronous>, transform_indices = @transform_3, window_bounds = array<i64: 64, 160>}, {pipeline_mode = #tpu.pipeline_mode<synchronous>, transform_indices = @transform_4, window_bounds = array<i64: 1, 160>}, {pipeline_mode = #tpu.pipeline_mode<synchronous>, transform_indices = @transform_5, window_bounds = array<i64: 32, 8>}, {pipeline_mode = #tpu.pipeline_mode<synchronous>, transform_indices = @transform_6, window_bounds = array<i64: 1, 8>}, {pipeline_mode = #tpu.pipeline_mode<synchronous>, transform_indices = @transform_7, window_bounds = array<i64: 16, 32>}, {pipeline_mode = #tpu.pipeline_mode<synchronous>, transform_indices = @transform_8, window_bounds = array<i64: 16, 32>}, {pipeline_mode = #tpu.pipeline_mode<synchronous>, transform_indices = @transform_9, window_bounds = array<i64: 8, 8>}]} {
    %c0_i32 = arith.constant 0 : i32
    %0 = arith.cmpi eq, %arg0, %c0_i32 : i32
    %1 = arith.extui %0 : i1 to i32
    %c0_i32_0 = arith.constant 0 : i32
    %2 = arith.cmpi ne, %1, %c0_i32_0 : i32
    scf.if %2 {
      %cst_23 = arith.constant 0.000000e+00 : f32
      %70 = vector.broadcast %cst_23 : f32 to vector<80x64xf32>
      %c0_24 = arith.constant 0 : index
      %c0_25 = arith.constant 0 : index
      %71 = vector.load %arg11[%c0_24, %c0_25] : memref<80x64xf32, #tpu.memory_space<vmem>>, vector<80x64xf32>
      tpu.vector_store %arg11[%c0_24, %c0_25], %70 {strides = array<i32>} : memref<80x64xf32, #tpu.memory_space<vmem>>, vector<80x64xf32>,
      %c0_26 = arith.constant 0 : index
      %c0_27 = arith.constant 0 : index
      %72 = vector.load %arg1[%c0_26, %c0_27] : memref<32x32xbf16, #tpu.memory_space<vmem>>, vector<32x32xbf16>
      %c0_28 = arith.constant 0 : index
      %c0_29 = arith.constant 0 : index
      %73 = vector.load %arg2[%c0_28, %c0_29] : memref<32x96xbf16, #tpu.memory_space<vmem>>, vector<32x96xbf16>
      %cst_30 = arith.constant dense<0.000000e+00> : vector<32x96xf32>
      %74 = tpu.matmul %72, %73, %cst_30 {dimension_numbers = #tpu.dot_dimension_numbers<[1], [0], [0], [1], [0, 0, 1, 1], [], []>} : vector<32x32xbf16>, vector<32x96xbf16>, vector<32x96xf32> -> vector<32x96xf32>
      %c0_31 = arith.constant 0 : index
      %c0_32 = arith.constant 0 : index
      %75 = vector.load %arg3[%c0_31, %c0_32] : memref<1x96xf32, #tpu.memory_space<vmem>>, vector<1x96xf32>
      %76 = vector.broadcast %75 : vector<1x96xf32> to vector<32x96xf32>
      %77 = arith.addf %74, %76 : vector<32x96xf32>
      %78 = vector.extract_strided_slice %77 {offsets = [0, 0], sizes = [32, 32], strides = [1, 1]} : vector<32x96xf32> to vector<32x32xf32>
      %79 = arith.negf %78 : vector<32x32xf32>
      %80 = math.exp %79 : vector<32x32xf32>
      %cst_33 = arith.constant 1.000000e+00 : f32
      %81 = vector.broadcast %cst_33 : f32 to vector<32x32xf32>
      %82 = arith.addf %81, %80 : vector<32x32xf32>
      %83 = arith.divf %81, %82 : vector<32x32xf32>
      %84 = vector.extract_strided_slice %77 {offsets = [0, 32], sizes = [32, 32], strides = [1, 1]} : vector<32x96xf32> to vector<32x32xf32>
      %85 = arith.negf %84 : vector<32x32xf32>
      %86 = math.exp %85 : vector<32x32xf32>
      %cst_34 = arith.constant 1.000000e+00 : f32
      %87 = vector.broadcast %cst_34 : f32 to vector<32x32xf32>
      %88 = arith.addf %87, %86 : vector<32x32xf32>
      %89 = arith.divf %87, %88 : vector<32x32xf32>
      %90 = vector.extract_strided_slice %77 {offsets = [0, 64], sizes = [32, 32], strides = [1, 1]} : vector<32x96xf32> to vector<32x32xf32>
      %91 = math.tanh %90 : vector<32x32xf32>
      %92 = arith.mulf %83, %91 : vector<32x32xf32>
      %93 = math.tanh %92 : vector<32x32xf32>
      %94 = arith.mulf %89, %93 : vector<32x32xf32>
      %95 = tpu.concatenate %94, %92 in 1 : vector<32x32xf32>, vector<32x32xf32> -> vector<32x64xf32>
      %c0_35 = arith.constant 0 : index
      %c0_36 = arith.constant 0 : index
      %96 = vector.load %arg11[%c0_35, %c0_36] : memref<80x64xf32, #tpu.memory_space<vmem>>, vector<32x64xf32>
      tpu.vector_store %arg11[%c0_35, %c0_36], %95 {strides = array<i32>} : memref<80x64xf32, #tpu.memory_space<vmem>>, vector<32x64xf32>,
    } else {
    }
    %c0_i32_1 = arith.constant 0 : i32
    %3 = arith.cmpi eq, %arg0, %c0_i32_1 : i32
    %c1_i32 = arith.constant 1 : i32
    %4 = arith.addi %arg0, %c1_i32 : i32
    %c16_i32 = arith.constant 16 : i32
    %5 = arith.muli %4, %c16_i32 : i32
    %c0_i32_2 = arith.constant 0 : i32
    %6 = arith.select %3, %c0_i32_2, %5 : i32
    %7 = tpu.assume_multiple %6, 8 : i32
    %8 = arith.index_cast %7 : i32 to index
    %c0 = arith.constant 0 : index
    %9 = vector.load %arg11[%8, %c0] : memref<80x64xf32, #tpu.memory_space<vmem>>, vector<32x64xf32>
    %10 = vector.extract_strided_slice %9 {offsets = [0, 0], sizes = [32, 32], strides = [1, 1]} : vector<32x64xf32> to vector<32x32xf32>
    %11 = arith.truncf %10 : vector<32x32xf32> to vector<32x32xbf16>
    %12 = vector.extract_strided_slice %9 {offsets = [0, 32], sizes = [32, 32], strides = [1, 1]} : vector<32x64xf32> to vector<32x32xf32>
    %c0_3 = arith.constant 0 : index
    %c0_4 = arith.constant 0 : index
    %13 = vector.load %arg8[%c0_3, %c0_4] : memref<16x32xbf16, #tpu.memory_space<vmem>>, vector<16x32xbf16>
    %c0_5 = arith.constant 0 : index
    %c0_6 = arith.constant 0 : index
    %14 = vector.load %arg9[%c0_5, %c0_6] : memref<16x32xbf16, #tpu.memory_space<vmem>>, vector<16x32xbf16>
    %cst = arith.constant dense<0.000000e+00> : vector<16x32xf32>
    %15 = tpu.matmul %13, %11, %cst {dimension_numbers = #tpu.dot_dimension_numbers<[1], [0], [0], [1], [0, 0, 1, 1], [], []>} : vector<16x32xbf16>, vector<32x32xbf16>, vector<16x32xf32> -> vector<16x32xf32>
    %cst_7 = arith.constant dense<0.000000e+00> : vector<16x32xf32>
    %16 = tpu.matmul %14, %11, %cst_7 {dimension_numbers = #tpu.dot_dimension_numbers<[1], [0], [0], [1], [0, 0, 1, 1], [], []>} : vector<16x32xbf16>, vector<32x32xbf16>, vector<16x32xf32> -> vector<16x32xf32>
    %17 = arith.extf %13 : vector<16x32xbf16> to vector<16x32xf32>
    %cst_8 = arith.constant dense<0.000000e+00> : vector<16x32xf32>
    %18 = tpu.matmul %17, %12, %cst_8 {dimension_numbers = #tpu.dot_dimension_numbers<[1], [0], [0], [1], [0, 0, 1, 1], [], []>} : vector<16x32xf32>, vector<32x32xf32>, vector<16x32xf32> -> vector<16x32xf32>
    %19 = arith.extf %14 : vector<16x32xbf16> to vector<16x32xf32>
    %cst_9 = arith.constant dense<0.000000e+00> : vector<16x32xf32>
    %20 = tpu.matmul %19, %12, %cst_9 {dimension_numbers = #tpu.dot_dimension_numbers<[1], [0], [0], [1], [0, 0, 1, 1], [], []>} : vector<16x32xf32>, vector<32x32xf32>, vector<16x32xf32> -> vector<16x32xf32>
    %21 = tpu.concatenate %15, %16 in 1 : vector<16x32xf32>, vector<16x32xf32> -> vector<16x64xf32>
    %22 = arith.truncf %21 : vector<16x64xf32> to vector<16x64xbf16>
    %c0_10 = arith.constant 0 : index
    %c0_11 = arith.constant 0 : index
    %23 = vector.load %arg4[%c0_10, %c0_11] : memref<64x160xbf16, #tpu.memory_space<vmem>>, vector<64x160xbf16>
    %cst_12 = arith.constant dense<0.000000e+00> : vector<16x160xf32>
    %24 = tpu.matmul %22, %23, %cst_12 {dimension_numbers = #tpu.dot_dimension_numbers<[1], [0], [0], [1], [0, 0, 1, 1], [], []>} : vector<16x64xbf16>, vector<64x160xbf16>, vector<16x160xf32> -> vector<16x160xf32>
    %c0_13 = arith.constant 0 : index
    %c0_14 = arith.constant 0 : index
    %25 = vector.load %arg5[%c0_13, %c0_14] : memref<1x160xf32, #tpu.memory_space<vmem>>, vector<1x160xf32>
    %26 = vector.broadcast %25 : vector<1x160xf32> to vector<16x160xf32>
    %27 = arith.addf %24, %26 : vector<16x160xf32>
    %28 = vector.extract_strided_slice %27 {offsets = [0, 0], sizes = [16, 32], strides = [1, 1]} : vector<16x160xf32> to vector<16x32xf32>
    %29 = arith.negf %28 : vector<16x32xf32>
    %30 = math.exp %29 : vector<16x32xf32>
    %cst_15 = arith.constant 1.000000e+00 : f32
    %31 = vector.broadcast %cst_15 : f32 to vector<16x32xf32>
    %32 = arith.addf %31, %30 : vector<16x32xf32>
    %33 = arith.divf %31, %32 : vector<16x32xf32>
    %34 = vector.extract_strided_slice %27 {offsets = [0, 32], sizes = [16, 32], strides = [1, 1]} : vector<16x160xf32> to vector<16x32xf32>
    %35 = arith.negf %34 : vector<16x32xf32>
    %36 = math.exp %35 : vector<16x32xf32>
    %cst_16 = arith.constant 1.000000e+00 : f32
    %37 = vector.broadcast %cst_16 : f32 to vector<16x32xf32>
    %38 = arith.addf %37, %36 : vector<16x32xf32>
    %39 = arith.divf %37, %38 : vector<16x32xf32>
    %40 = vector.extract_strided_slice %27 {offsets = [0, 64], sizes = [16, 32], strides = [1, 1]} : vector<16x160xf32> to vector<16x32xf32>
    %41 = arith.negf %40 : vector<16x32xf32>
    %42 = math.exp %41 : vector<16x32xf32>
    %cst_17 = arith.constant 1.000000e+00 : f32
    %43 = vector.broadcast %cst_17 : f32 to vector<16x32xf32>
    %44 = arith.addf %43, %42 : vector<16x32xf32>
    %45 = arith.divf %43, %44 : vector<16x32xf32>
    %46 = vector.extract_strided_slice %27 {offsets = [0, 96], sizes = [16, 32], strides = [1, 1]} : vector<16x160xf32> to vector<16x32xf32>
    %47 = arith.negf %46 : vector<16x32xf32>
    %48 = math.exp %47 : vector<16x32xf32>
    %cst_18 = arith.constant 1.000000e+00 : f32
    %49 = vector.broadcast %cst_18 : f32 to vector<16x32xf32>
    %50 = arith.addf %49, %48 : vector<16x32xf32>
    %51 = arith.divf %49, %50 : vector<16x32xf32>
    %52 = vector.extract_strided_slice %27 {offsets = [0, 128], sizes = [16, 32], strides = [1, 1]} : vector<16x160xf32> to vector<16x32xf32>
    %53 = math.tanh %52 : vector<16x32xf32>
    %54 = arith.mulf %45, %53 : vector<16x32xf32>
    %55 = arith.mulf %33, %18 : vector<16x32xf32>
    %56 = arith.addf %54, %55 : vector<16x32xf32>
    %57 = arith.mulf %39, %20 : vector<16x32xf32>
    %58 = arith.addf %56, %57 : vector<16x32xf32>
    %59 = math.tanh %58 : vector<16x32xf32>
    %60 = arith.mulf %51, %59 : vector<16x32xf32>
    %c2_i32 = arith.constant 2 : i32
    %61 = arith.addi %arg0, %c2_i32 : i32
    %c16_i32_19 = arith.constant 16 : i32
    %62 = arith.muli %61, %c16_i32_19 : i32
    %63 = tpu.assume_multiple %62, 8 : i32
    %64 = tpu.concatenate %60, %58 in 1 : vector<16x32xf32>, vector<16x32xf32> -> vector<16x64xf32>
    %65 = arith.index_cast %63 : i32 to index
    %c0_20 = arith.constant 0 : index
    %66 = vector.load %arg11[%65, %c0_20] : memref<80x64xf32, #tpu.memory_space<vmem>>, vector<16x64xf32>
    tpu.vector_store %arg11[%65, %c0_20], %64 {strides = array<i32>} : memref<80x64xf32, #tpu.memory_space<vmem>>, vector<16x64xf32>,
    %c2_i32_21 = arith.constant 2 : i32
    %67 = arith.cmpi eq, %arg0, %c2_i32_21 : i32
    %68 = arith.extui %67 : i1 to i32
    %c0_i32_22 = arith.constant 0 : i32
    %69 = arith.cmpi ne, %68, %c0_i32_22 : i32
    scf.if %69 {
      %c64 = arith.constant 64 : index
      %c0_23 = arith.constant 0 : index
      %70 = vector.load %arg11[%c64, %c0_23] : memref<80x64xf32, #tpu.memory_space<vmem>>, vector<8x32xf32>
      %71 = arith.truncf %70 : vector<8x32xf32> to vector<8x32xbf16>
      %c0_24 = arith.constant 0 : index
      %c0_25 = arith.constant 0 : index
      %72 = vector.load %arg6[%c0_24, %c0_25] : memref<32x8xbf16, #tpu.memory_space<vmem>>, vector<32x8xbf16>
      %cst_26 = arith.constant dense<0.000000e+00> : vector<8x8xf32>
      %73 = tpu.matmul %71, %72, %cst_26 {dimension_numbers = #tpu.dot_dimension_numbers<[1], [0], [0], [1], [0, 0, 1, 1], [], []>} : vector<8x32xbf16>, vector<32x8xbf16>, vector<8x8xf32> -> vector<8x8xf32>
      %c0_27 = arith.constant 0 : index
      %c0_28 = arith.constant 0 : index
      %74 = vector.load %arg7[%c0_27, %c0_28] : memref<1x8xf32, #tpu.memory_space<vmem>>, vector<1x8xf32>
      %75 = vector.broadcast %74 : vector<1x8xf32> to vector<8x8xf32>
      %76 = arith.addf %73, %75 : vector<8x8xf32>
      %cst_29 = arith.constant dense<0xFF800000> : vector<8xf32>
      %77 = vector.multi_reduction <maximumf>, %76, %cst_29 [1] : vector<8x8xf32> to vector<8xf32>
      %78 = vector.shape_cast %77 : vector<8xf32> to vector<8x1xf32>
      %79 = vector.broadcast %78 : vector<8x1xf32> to vector<8x8xf32>
      %80 = arith.subf %76, %79 : vector<8x8xf32>
      %81 = math.exp %80 : vector<8x8xf32>
      %cst_30 = arith.constant dense<0.000000e+00> : vector<8xf32>
      %82 = vector.multi_reduction <add>, %81, %cst_30 [1] : vector<8x8xf32> to vector<8xf32>
      %83 = vector.shape_cast %82 : vector<8xf32> to vector<8x1xf32>
      %84 = math.log %83 : vector<8x1xf32>
      %85 = vector.broadcast %84 : vector<8x1xf32> to vector<8x8xf32>
      %86 = arith.subf %80, %85 : vector<8x8xf32>
      %c0_31 = arith.constant 0 : index
      %c0_32 = arith.constant 0 : index
      %87 = vector.load %arg10[%c0_31, %c0_32] : memref<8x8xf32, #tpu.memory_space<vmem>>, vector<8x8xf32>
      tpu.vector_store %arg10[%c0_31, %c0_32], %86 {strides = array<i32>} : memref<8x8xf32, #tpu.memory_space<vmem>>, vector<8x8xf32>,
    } else {
    }
    return
  }
  func.func @transform_0(%arg0: i32) -> (i32, i32) {
    %c0_i32 = arith.constant 0 : i32
    %c0_i32_0 = arith.constant 0 : i32
    %c0_i32_1 = arith.constant 0 : i32
    return %c0_i32, %c0_i32_0 : i32, i32
  }
  func.func @transform_1(%arg0: i32) -> (i32, i32) {
    %c0_i32 = arith.constant 0 : i32
    %c0_i32_0 = arith.constant 0 : i32
    %c0_i32_1 = arith.constant 0 : i32
    return %c0_i32, %c0_i32_0 : i32, i32
  }
  func.func @transform_2(%arg0: i32) -> (i32, i32) {
    %c0_i32 = arith.constant 0 : i32
    %c0_i32_0 = arith.constant 0 : i32
    %c0_i32_1 = arith.constant 0 : i32
    return %c0_i32, %c0_i32_0 : i32, i32
  }
  func.func @transform_3(%arg0: i32) -> (i32, i32) {
    %c0_i32 = arith.constant 0 : i32
    %c0_i32_0 = arith.constant 0 : i32
    %c0_i32_1 = arith.constant 0 : i32
    return %c0_i32, %c0_i32_0 : i32, i32
  }
  func.func @transform_4(%arg0: i32) -> (i32, i32) {
    %c0_i32 = arith.constant 0 : i32
    %c0_i32_0 = arith.constant 0 : i32
    %c0_i32_1 = arith.constant 0 : i32
    return %c0_i32, %c0_i32_0 : i32, i32
  }
  func.func @transform_5(%arg0: i32) -> (i32, i32) {
    %c0_i32 = arith.constant 0 : i32
    %c0_i32_0 = arith.constant 0 : i32
    %c0_i32_1 = arith.constant 0 : i32
    return %c0_i32, %c0_i32_0 : i32, i32
  }
  func.func @transform_6(%arg0: i32) -> (i32, i32) {
    %c0_i32 = arith.constant 0 : i32
    %c0_i32_0 = arith.constant 0 : i32
    %c0_i32_1 = arith.constant 0 : i32
    return %c0_i32, %c0_i32_0 : i32, i32
  }
  func.func @transform_7(%arg0: i32) -> (i32, i32) {
    %c0_i32 = arith.constant 0 : i32
    %c0_i32_0 = arith.constant 0 : i32
    %c0_i32_1 = arith.constant 0 : i32
    return %c0_i32, %c0_i32_0 : i32, i32
  }
  func.func @transform_8(%arg0: i32) -> (i32, i32) {
    %c0_i32 = arith.constant 0 : i32
    %c0_i32_0 = arith.constant 0 : i32
    %c0_i32_1 = arith.constant 0 : i32
    return %c0_i32, %c0_i32_0 : i32, i32
  }
  func.func @transform_9(%arg0: i32) -> (i32, i32) {
    %c0_i32 = arith.constant 0 : i32
    %c0_i32_0 = arith.constant 0 : i32
    %c0_i32_1 = arith.constant 0 : i32
    return %c0_i32, %c0_i32_0 : i32, i32
  }
}

</mosaic_0001>

<llo_original>
// kernel: tpu_custom_call.1
$region0: #{tpu_custom_call.1}
  #allocation0 [shape = 'u32[]', space=smem, size = 0x4, offset = 0x4, fixed_abs, tag = 'smem constant byte address 0x4 - core index']
  #allocation1 [shape = 'u32[144,128]{1,0:T(1,128)}', space=vmem, size = 0x12000, scoped, tag = 'internal scratch']
  #allocation2 [shape = 'f32[80,64]{1,0:T(8,128)}', space=vmem, size = 0xa000, scoped, tag = 'scratch operand']
  %s0 = inlined_call_operand.vmem [shape: bf16[32,32], index: 0, kind: input, shape index: {}]
  %s1 = inlined_call_operand.hbm [shape: bf16[32,96], index: 1, kind: input, shape index: {}]
  %s2 = inlined_call_operand.hbm [shape: f32[1,96], index: 2, kind: input, shape index: {}]
  %s3 = inlined_call_operand.hbm [shape: bf16[64,160], index: 3, kind: input, shape index: {}]
  %s4 = inlined_call_operand.hbm [shape: f32[1,160], index: 4, kind: input, shape index: {}]
  %s5 = inlined_call_operand.vmem [shape: bf16[32,8], index: 5, kind: input, shape index: {}]
  %s6 = inlined_call_operand.hbm [shape: f32[1,8], index: 6, kind: input, shape index: {}]
  %s7 = inlined_call_operand.vmem [shape: bf16[16,32], index: 7, kind: input, shape index: {}]
  %s8 = inlined_call_operand.vmem [shape: bf16[16,32], index: 8, kind: input, shape index: {}]
  %s9 = inlined_call_operand.hbm [shape: f32[8,8], index: 9, kind: output, shape index: {}]
  %s10 = sld [smem:[#allocation0]]
  $region97: #{tpu_custom_call.1} parent=0
    _
  %s12 = ssub.s32 1, %s10
  %s13 = scalar_select 0, %s12, %s10
  $region1: #{tpu_custom_call.1} parent=0
    #allocation3 [shape = 'u8[8192]{0}', space=vmem, size = 0x2000, scoped, tag = 'input window, operand 1, single buffered']
    #allocation4 [shape = 's32[2]{0}', space=sflag, size = 0x8, scoped, tag = 'scoped memory for tpu_custom_call.1']
    #allocation5 [shape = 's32[2]{0}', space=sflag, size = 0x8, scoped, tag = 'scoped memory for tpu_custom_call.1']
    #allocation6 [shape = 'u8[512]{0}', space=vmem, size = 0x400, scoped, tag = 'input window, operand 2, single buffered']
    #allocation7 [shape = 's32[1]{0}', space=sflag, size = 0x4, scoped, tag = 'scoped memory for tpu_custom_call.1']
    #allocation8 [shape = 'u8[32768]{0}', space=vmem, size = 0x8000, scoped, tag = 'input window, operand 3, single buffered']
    #allocation9 [shape = 'u8[1024]{0}', space=vmem, size = 0x400, scoped, tag = 'input window, operand 4, single buffered']
    #allocation10 [shape = 's32[1]{0}', space=sflag, size = 0x4, scoped, tag = 'scoped memory for tpu_custom_call.1']
    #allocation11 [shape = 'u8[512]{0}', space=vmem, size = 0x400, scoped, tag = 'input window, operand 6, single buffered']
    #allocation12 [shape = 'u8[4096]{0}', space=vmem, size = 0x1000, scoped, tag = 'output window, operand 0, single buffered']
    %14 = vsyncpa [#allocation4], 0
    %15 = vsyncpa [#allocation7], 0
    %16 = vsyncpa [#allocation10], 0
    %17 = vsyncpa [#allocation5], 0
    loop: start=0, step=1, limit=5
    $region2: #{tpu_custom_call.1} parent=1 // loop_pre_header
      _
    $region3: #{tpu_custom_call.1} parent=1 // loop_header
      %s19 = sphi 0, %s23
      %p20 = scmp.ge.s32.totalorder %s19, 5
      %s27 = sphi 0, %s27
      %s29 = sphi 0, %s27
      %s30 = sphi 0, %s29
      %s44 = sphi 0, %s30
      %s48 = sphi 0, %s48
      %s50 = sphi 0, %s48
      %s51 = sphi 0, %s50
      %s65 = sphi 0, %s51
      %s69 = sphi 0, %s69
      %s71 = sphi 0, %s69
      %s72 = sphi 0, %s71
      %s86 = sphi 0, %s72
      %s90 = sphi 0, %s90
      %s92 = sphi 0, %s90
      %s93 = sphi 0, %s92
      %s107 = sphi 0, %s93
      %s111 = sphi 0, %s111
      %s113 = sphi 0, %s111
      %s114 = sphi 0, %s113
      %s128 = sphi 0, %s114
      %s132 = sphi 0, %s132
      %s134 = sphi 0, %s132
      %s135 = sphi 0, %s134
      %s149 = sphi 0, %s135
      %s153 = sphi 0, %s153
      %s155 = sphi 0, %s153
      %s156 = sphi 0, %s155
      %s170 = sphi 0, %s156
      %s174 = sphi 0, %s174
      %s176 = sphi 0, %s174
      %s177 = sphi 0, %s176
      %s191 = sphi 0, %s177
      %s195 = sphi 0, %s195
      %s197 = sphi 0, %s195
      %s198 = sphi 0, %s197
      %s212 = sphi 0, %s198
      %s216 = sphi 0, %s216
      %s218 = sphi 0, %s216
      %s219 = sphi 0, %s218
      %s233 = sphi 0, %s219
    $region4: #{tpu_custom_call.1} parent=1 // loop_header_branch
      %22 = sbr.rel (%p20) target = $region8
    $region5: #{tpu_custom_call.1} parent=1 // loop_body
      %s24 = ssub.s32 %s19, 1
      %s25 = ssub.s32 %s19, 2
      %s26 = sadd.s32 %s19, 1
      %s28 = sadd.s32 %s27, 1
      %p31 = scmp.eq.s32.totalorder %s19, 2
      %p32 = scmp.ne.s32.totalorder %s27, %s29
      %p33 = scmp.eq.s32.totalorder %s19, 0
      %p34 = por %p32, %p33
      %p35 = scmp.ne.s32.totalorder %s27, %s29
      %p36 = scmp.eq.s32.totalorder %s24, 2
      %p37 = por %p35, %p36
      %p38 = scmp.ne.s32.totalorder %s29, %s30
      %p39 = scmp.eq.s32.totalorder %s24, 0
      %p40 = por %p38, %p39
      %p41 = scmp.ne.s32.totalorder %s29, %s30
      %p42 = scmp.eq.s32.totalorder %s25, 2
      %p43 = por %p41, %p42
      %p45 = scmp.ne.s32.totalorder %s30, %s44
      %p46 = scmp.eq.s32.totalorder %s25, 0
      %p47 = por %p45, %p46
      %s49 = sadd.s32 %s48, 1
      %p52 = scmp.eq.s32.totalorder %s19, 2
      %p53 = scmp.ne.s32.totalorder %s48, %s50
      %p54 = scmp.eq.s32.totalorder %s19, 0
      %p55 = por %p53, %p54
      %p56 = scmp.ne.s32.totalorder %s48, %s50
      %p57 = scmp.eq.s32.totalorder %s24, 2
      %p58 = por %p56, %p57
      %p59 = scmp.ne.s32.totalorder %s50, %s51
      %p60 = scmp.eq.s32.totalorder %s24, 0
      %p61 = por %p59, %p60
      %p62 = scmp.ne.s32.totalorder %s50, %s51
      %p63 = scmp.eq.s32.totalorder %s25, 2
      %p64 = por %p62, %p63
      %p66 = scmp.ne.s32.totalorder %s51, %s65
      %p67 = scmp.eq.s32.totalorder %s25, 0
      %p68 = por %p66, %p67
      %s70 = sadd.s32 %s69, 1
      %p73 = scmp.eq.s32.totalorder %s19, 2
      %p74 = scmp.ne.s32.totalorder %s69, %s71
      %p75 = scmp.eq.s32.totalorder %s19, 0
      %p76 = por %p74, %p75
      %p77 = scmp.ne.s32.totalorder %s69, %s71
      %p78 = scmp.eq.s32.totalorder %s24, 2
      %p79 = por %p77, %p78
      %p80 = scmp.ne.s32.totalorder %s71, %s72
      %p81 = scmp.eq.s32.totalorder %s24, 0
      %p82 = por %p80, %p81
      %p83 = scmp.ne.s32.totalorder %s71, %s72
      %p84 = scmp.eq.s32.totalorder %s25, 2
      %p85 = por %p83, %p84
      %p87 = scmp.ne.s32.totalorder %s72, %s86
      %p88 = scmp.eq.s32.totalorder %s25, 0
      %p89 = por %p87, %p88
      %s91 = sadd.s32 %s90, 1
      %p94 = scmp.eq.s32.totalorder %s19, 2
      %p95 = scmp.ne.s32.totalorder %s90, %s92
      %p96 = scmp.eq.s32.totalorder %s19, 0
      %p97 = por %p95, %p96
      %p98 = scmp.ne.s32.totalorder %s90, %s92
      %p99 = scmp.eq.s32.totalorder %s24, 2
      %p100 = por %p98, %p99
      %p101 = scmp.ne.s32.totalorder %s92, %s93
      %p102 = scmp.eq.s32.totalorder %s24, 0
      %p103 = por %p101, %p102
      %p104 = scmp.ne.s32.totalorder %s92, %s93
      %p105 = scmp.eq.s32.totalorder %s25, 2
      %p106 = por %p104, %p105
      %p108 = scmp.ne.s32.totalorder %s93, %s107
      %p109 = scmp.eq.s32.totalorder %s25, 0
      %p110 = por %p108, %p109
      %s112 = sadd.s32 %s111, 1
      %p115 = scmp.eq.s32.totalorder %s19, 2
      %p116 = scmp.ne.s32.totalorder %s111, %s113
      %p117 = scmp.eq.s32.totalorder %s19, 0
      %p118 = por %p116, %p117
      %p119 = scmp.ne.s32.totalorder %s111, %s113
      %p120 = scmp.eq.s32.totalorder %s24, 2
      %p121 = por %p119, %p120
      %p122 = scmp.ne.s32.totalorder %s113, %s114
      %p123 = scmp.eq.s32.totalorder %s24, 0
      %p124 = por %p122, %p123
      %p125 = scmp.ne.s32.totalorder %s113, %s114
      %p126 = scmp.eq.s32.totalorder %s25, 2
      %p127 = por %p125, %p126
      %p129 = scmp.ne.s32.totalorder %s114, %s128
      %p130 = scmp.eq.s32.totalorder %s25, 0
      %p131 = por %p129, %p130
      %s133 = sadd.s32 %s132, 1
      %p136 = scmp.eq.s32.totalorder %s19, 2
      %p137 = scmp.ne.s32.totalorder %s132, %s134
      %p138 = scmp.eq.s32.totalorder %s19, 0
      %p139 = por %p137, %p138
      %p140 = scmp.ne.s32.totalorder %s132, %s134
      %p141 = scmp.eq.s32.totalorder %s24, 2
      %p142 = por %p140, %p141
      %p143 = scmp.ne.s32.totalorder %s134, %s135
      %p144 = scmp.eq.s32.totalorder %s24, 0
      %p145 = por %p143, %p144
      %p146 = scmp.ne.s32.totalorder %s134, %s135
      %p147 = scmp.eq.s32.totalorder %s25, 2
      %p148 = por %p146, %p147
      %p150 = scmp.ne.s32.totalorder %s135, %s149
      %p151 = scmp.eq.s32.totalorder %s25, 0
      %p152 = por %p150, %p151
      %s154 = sadd.s32 %s153, 1
      %p157 = scmp.eq.s32.totalorder %s19, 2
      %p158 = scmp.ne.s32.totalorder %s153, %s155
      %p159 = scmp.eq.s32.totalorder %s19, 0
      %p160 = por %p158, %p159
      %p161 = scmp.ne.s32.totalorder %s153, %s155
      %p162 = scmp.eq.s32.totalorder %s24, 2
      %p163 = por %p161, %p162
      %p164 = scmp.ne.s32.totalorder %s155, %s156
      %p165 = scmp.eq.s32.totalorder %s24, 0
      %p166 = por %p164, %p165
      %p167 = scmp.ne.s32.totalorder %s155, %s156
      %p168 = scmp.eq.s32.totalorder %s25, 2
      %p169 = por %p167, %p168
      %p171 = scmp.ne.s32.totalorder %s156, %s170
      %p172 = scmp.eq.s32.totalorder %s25, 0
      %p173 = por %p171, %p172
      %s175 = sadd.s32 %s174, 1
      %p178 = scmp.eq.s32.totalorder %s19, 2
      %p179 = scmp.ne.s32.totalorder %s174, %s176
      %p180 = scmp.eq.s32.totalorder %s19, 0
      %p181 = por %p179, %p180
      %p182 = scmp.ne.s32.totalorder %s174, %s176
      %p183 = scmp.eq.s32.totalorder %s24, 2
      %p184 = por %p182, %p183
      %p185 = scmp.ne.s32.totalorder %s176, %s177
      %p186 = scmp.eq.s32.totalorder %s24, 0
      %p187 = por %p185, %p186
      %p188 = scmp.ne.s32.totalorder %s176, %s177
      %p189 = scmp.eq.s32.totalorder %s25, 2
      %p190 = por %p188, %p189
      %p192 = scmp.ne.s32.totalorder %s177, %s191
      %p193 = scmp.eq.s32.totalorder %s25, 0
      %p194 = por %p192, %p193
      %s196 = sadd.s32 %s195, 1
      %p199 = scmp.eq.s32.totalorder %s19, 2
      %p200 = scmp.ne.s32.totalorder %s195, %s197
      %p201 = scmp.eq.s32.totalorder %s19, 0
      %p202 = por %p200, %p201
      %p203 = scmp.ne.s32.totalorder %s195, %s197
      %p204 = scmp.eq.s32.totalorder %s24, 2
      %p205 = por %p203, %p204
      %p206 = scmp.ne.s32.totalorder %s197, %s198
      %p207 = scmp.eq.s32.totalorder %s24, 0
      %p208 = por %p206, %p207
      %p209 = scmp.ne.s32.totalorder %s197, %s198
      %p210 = scmp.eq.s32.totalorder %s25, 2
      %p211 = por %p209, %p210
      %p213 = scmp.ne.s32.totalorder %s198, %s212
      %p214 = scmp.eq.s32.totalorder %s25, 0
      %p215 = por %p213, %p214
      %s217 = sadd.s32 %s216, 1
      %p220 = scmp.eq.s32.totalorder %s19, 2
      %p221 = scmp.ne.s32.totalorder %s216, %s218
      %p222 = scmp.eq.s32.totalorder %s19, 0
      %p223 = por %p221, %p222
      %p224 = scmp.ne.s32.totalorder %s216, %s218
      %p225 = scmp.eq.s32.totalorder %s24, 2
      %p226 = por %p224, %p225
      %p227 = scmp.ne.s32.totalorder %s218, %s219
      %p228 = scmp.eq.s32.totalorder %s24, 0
      %p229 = por %p227, %p228
      %p230 = scmp.ne.s32.totalorder %s218, %s219
      %p231 = scmp.eq.s32.totalorder %s25, 2
      %p232 = por %p230, %p231
      %p234 = scmp.ne.s32.totalorder %s219, %s233
      %p235 = scmp.eq.s32.totalorder %s25, 0
      %p236 = por %p234, %p235
      %p237 = scmp.le.s32.totalorder 1, %s19
      %p238 = scmp.lt.s32.totalorder %s19, 4
      %p239 = pnand %p237, %p238
      %p240 = pneg %p239
      // Predicated region
      $region9: #{tpu_custom_call.1} parent=5 // pred_check
        _
      $region10: #{tpu_custom_call.1} parent=5 // pred_check_branch
        %242 = sbr.rel (%p239) target = $region12
      $region11: #{tpu_custom_call.1} parent=5 // pred_region
        %s243 = ssub.s32 %s19, 1
        // Predicated region
        $region13: #{tpu_custom_call.1} parent=11 // pred_check
          %p244 = pneg %p40
        $region14: #{tpu_custom_call.1} parent=11 // pred_check_branch
          %246 = sbr.rel (%p244) target = $region16
        $region15: #{tpu_custom_call.1} parent=11 // pred_region
          _
        $region16: #{tpu_custom_call.1} parent=11 // pred_fallthru
          _
        // Predicated region
        $region17: #{tpu_custom_call.1} parent=11 // pred_check
          %p247 = pneg %p61
        $region18: #{tpu_custom_call.1} parent=11 // pred_check_branch
          %249 = sbr.rel (%p247) target = $region20
        $region19: #{tpu_custom_call.1} parent=11 // pred_region
          %s251 = ssub.s32 256, 256
          %252 = vsyncadd [#allocation4], %s251
          %s253 = sshll.u32 [#allocation3], 4
          %s254 = int_to_ptr.vmem [resolvable:$true] %s253
          %259 = dma.hbm_to_vmem [thread:$0]  %s1, 256, %s254, [#allocation4], 64, 64, 4
        $region20: #{tpu_custom_call.1} parent=11 // pred_fallthru
          _
        // Predicated region
        $region21: #{tpu_custom_call.1} parent=11 // pred_check
          %p260 = pneg %p82
        $region22: #{tpu_custom_call.1} parent=11 // pred_check_branch
          %262 = sbr.rel (%p260) target = $region24
        $region23: #{tpu_custom_call.1} parent=11 // pred_region
          %s264 = ssub.s32 16, 16
          %265 = vsyncadd [#allocation7], %s264
          %s267 = sshll.u32 [#allocation6], 4
          %s268 = int_to_ptr.vmem [resolvable:$true] %s267
          %270 = dma.hbm_to_vmem [thread:$0]  %s2, 16, %s268, [#allocation7]
        $region24: #{tpu_custom_call.1} parent=11 // pred_fallthru
          _
        // Predicated region
        $region25: #{tpu_custom_call.1} parent=11 // pred_check
          %p271 = pneg %p103
        $region26: #{tpu_custom_call.1} parent=11 // pred_check_branch
          %273 = sbr.rel (%p271) target = $region28
        $region27: #{tpu_custom_call.1} parent=11 // pred_region
          %s275 = ssub.s32 1024, 1024
          %276 = vsyncadd [#allocation7], %s275
          %s277 = sshll.u32 [#allocation8], 4
          %s278 = int_to_ptr.vmem [resolvable:$true] %s277
          %283 = dma.hbm_to_vmem [thread:$0]  %s3, 1024, %s278, [#allocation7], 128, 128, 8
        $region28: #{tpu_custom_call.1} parent=11 // pred_fallthru
          _
        // Predicated region
        $region29: #{tpu_custom_call.1} parent=11 // pred_check
          %p284 = pneg %p124
        $region30: #{tpu_custom_call.1} parent=11 // pred_check_branch
          %286 = sbr.rel (%p284) target = $region32
        $region31: #{tpu_custom_call.1} parent=11 // pred_region
          %s288 = ssub.s32 32, 32
          %289 = vsyncadd [#allocation10], %s288
          %s291 = sshll.u32 [#allocation9], 4
          %s292 = int_to_ptr.vmem [resolvable:$true] %s291
          %294 = dma.hbm_to_vmem [thread:$0]  %s4, 32, %s292, [#allocation10]
        $region32: #{tpu_custom_call.1} parent=11 // pred_fallthru
          _
        // Predicated region
        $region33: #{tpu_custom_call.1} parent=11 // pred_check
          %p295 = pneg %p145
        $region34: #{tpu_custom_call.1} parent=11 // pred_check_branch
          %297 = sbr.rel (%p295) target = $region36
        $region35: #{tpu_custom_call.1} parent=11 // pred_region
          _
        $region36: #{tpu_custom_call.1} parent=11 // pred_fallthru
          _
        // Predicated region
        $region37: #{tpu_custom_call.1} parent=11 // pred_check
          %p298 = pneg %p166
        $region38: #{tpu_custom_call.1} parent=11 // pred_check_branch
          %300 = sbr.rel (%p298) target = $region40
        $region39: #{tpu_custom_call.1} parent=11 // pred_region
          %s302 = ssub.s32 16, 16
          %303 = vsyncadd [#allocation10], %s302
          %s305 = sshll.u32 [#allocation11], 4
          %s306 = int_to_ptr.vmem [resolvable:$true] %s305
          %308 = dma.hbm_to_vmem [thread:$0]  %s6, 16, %s306, [#allocation10]
        $region40: #{tpu_custom_call.1} parent=11 // pred_fallthru
          _
        // Predicated region
        $region41: #{tpu_custom_call.1} parent=11 // pred_check
          %p309 = pneg %p187
        $region42: #{tpu_custom_call.1} parent=11 // pred_check_branch
          %311 = sbr.rel (%p309) target = $region44
        $region43: #{tpu_custom_call.1} parent=11 // pred_region
          _
        $region44: #{tpu_custom_call.1} parent=11 // pred_fallthru
          _
        // Predicated region
        $region45: #{tpu_custom_call.1} parent=11 // pred_check
          %p312 = pneg %p208
        $region46: #{tpu_custom_call.1} parent=11 // pred_check_branch
          %314 = sbr.rel (%p312) target = $region48
        $region47: #{tpu_custom_call.1} parent=11 // pred_region
          _
        $region48: #{tpu_custom_call.1} parent=11 // pred_fallthru
          _
      $region12: #{tpu_custom_call.1} parent=5 // pred_fallthru
        _
      %p315 = scmp.lt.s32.totalorder %s19, 3
      // Predicated region
      $region49: #{tpu_custom_call.1} parent=5 // pred_check
        %p316 = pneg %p315
      $region50: #{tpu_custom_call.1} parent=5 // pred_check_branch
        %318 = sbr.rel (%p316) target = $region52
      $region51: #{tpu_custom_call.1} parent=5 // pred_region
        _
      $region52: #{tpu_custom_call.1} parent=5 // pred_fallthru
        _
      %p319 = scmp.le.s32.totalorder 1, %s19
      %p320 = scmp.lt.s32.totalorder %s19, 4
      %p321 = pnand %p319, %p320
      %p322 = pneg %p321
      // Predicated region
      $region53: #{tpu_custom_call.1} parent=5 // pred_check
        _
      $region54: #{tpu_custom_call.1} parent=5 // pred_check_branch
        %324 = sbr.rel (%p321) target = $region56
      $region55: #{tpu_custom_call.1} parent=5 // pred_region
        %s325 = ssub.s32 %s19, 1
        // Predicated region
        $region57: #{tpu_custom_call.1} parent=55 // pred_check
          %p326 = pneg %p61
        $region58: #{tpu_custom_call.1} parent=55 // pred_check_branch
          %328 = sbr.rel (%p326) target = $region60
        $region59: #{tpu_custom_call.1} parent=55 // pred_region
          %329 = dma.done [#allocation4], 256
        $region60: #{tpu_custom_call.1} parent=55 // pred_fallthru
          _
        // Predicated region
        $region61: #{tpu_custom_call.1} parent=55 // pred_check
          %p330 = pneg %p82
        $region62: #{tpu_custom_call.1} parent=55 // pred_check_branch
          %332 = sbr.rel (%p330) target = $region64
        $region63: #{tpu_custom_call.1} parent=55 // pred_region
          %333 = dma.done [#allocation7], 16
        $region64: #{tpu_custom_call.1} parent=55 // pred_fallthru
          _
        // Predicated region
        $region65: #{tpu_custom_call.1} parent=55 // pred_check
          %p334 = pneg %p103
        $region66: #{tpu_custom_call.1} parent=55 // pred_check_branch
          %336 = sbr.rel (%p334) target = $region68
        $region67: #{tpu_custom_call.1} parent=55 // pred_region
          %337 = dma.done [#allocation7], 1024
        $region68: #{tpu_custom_call.1} parent=55 // pred_fallthru
          _
        // Predicated region
        $region69: #{tpu_custom_call.1} parent=55 // pred_check
          %p338 = pneg %p124
        $region70: #{tpu_custom_call.1} parent=55 // pred_check_branch
          %340 = sbr.rel (%p338) target = $region72
        $region71: #{tpu_custom_call.1} parent=55 // pred_region
          %341 = dma.done [#allocation10], 32
        $region72: #{tpu_custom_call.1} parent=55 // pred_fallthru
          _
        // Predicated region
        $region73: #{tpu_custom_call.1} parent=55 // pred_check
          %p342 = pneg %p166
        $region74: #{tpu_custom_call.1} parent=55 // pred_check_branch
          %344 = sbr.rel (%p342) target = $region76
        $region75: #{tpu_custom_call.1} parent=55 // pred_region
          %345 = dma.done [#allocation10], 16
        $region76: #{tpu_custom_call.1} parent=55 // pred_fallthru
          _
        %p346 = pneg %p40
        %p347 = pneg %p37
        %p348 = pneg %p61
        %p349 = pneg %p58
        %p350 = pneg %p82
        %p351 = pneg %p79
        %p352 = pneg %p103
        %p353 = pneg %p100
        %p354 = pneg %p124
        %p355 = pneg %p121
        %p356 = pneg %p145
        %p357 = pneg %p142
        %p358 = pneg %p166
        %p359 = pneg %p163
        %p360 = pneg %p187
        %p361 = pneg %p184
        %p362 = pneg %p208
        %p363 = pneg %p205
        %p364 = pneg %p229
        %p365 = pneg %p226
        %p367 = scmp.eq.s32.totalorder %s24, 0
        // Predicated region
        $region77: #{tpu_custom_call.1} parent=55 // pred_check
          %p368 = pneg %p367
        $region78: #{tpu_custom_call.1} parent=55 // pred_check_branch
          %370 = sbr.rel (%p368) target = $region80
        $region79: #{tpu_custom_call.1} parent=55 // pred_region
          %vm371 = vcmask 523264
          %372 = vst.msk [vmem:[#allocation2] sm:$0xff] %vm371, 0.0
          %373 = vst.msk [vmem:[#allocation2 + $0x8] sm:$0xff] %vm371, 0.0
          %374 = vst.msk [vmem:[#allocation2 + $0x10] sm:$0xff] %vm371, 0.0
          %375 = vst.msk [vmem:[#allocation2 + $0x18] sm:$0xff] %vm371, 0.0
          %376 = vst.msk [vmem:[#allocation2 + $0x20] sm:$0xff] %vm371, 0.0
          %377 = vst.msk [vmem:[#allocation2 + $0x28] sm:$0xff] %vm371, 0.0
          %378 = vst.msk [vmem:[#allocation2 + $0x30] sm:$0xff] %vm371, 0.0
          %379 = vst.msk [vmem:[#allocation2 + $0x38] sm:$0xff] %vm371, 0.0
          %380 = vst.msk [vmem:[#allocation2 + $0x40] sm:$0xff] %vm371, 0.0
          %381 = vst.msk [vmem:[#allocation2 + $0x48] sm:$0xff] %vm371, 0.0
          %v382 = vld [vmem:[%s0] sm:$0xf]
          %v383 = vld [vmem:[%s0 + $0x4] sm:$0xf]
          %v384 = vld [vmem:[%s0 + $0x8] sm:$0xf]
          %v385 = vld [vmem:[%s0 + $0xc] sm:$0xf]
          %v386 = vld [vmem:[#allocation3] sm:$0xf]
          %v387 = vld [vmem:[#allocation3 + $0x4] sm:$0xf]
          %v388 = vld [vmem:[#allocation3 + $0x8] sm:$0xf]
          %v389 = vld [vmem:[#allocation3 + $0xc] sm:$0xf]
          %v390 = vld [vmem:[#allocation6] sm:$0x1]
          %v392 = vlaneseq
          %v393 = vshrl.u32 %v392, 7
          %v394 = vsub.s32 0, %v393
          %v395 = vrot.slane %v390, %v394
          %v401 = vunpack.c.l.b16 %v382
          %v402 = vunpack.c.l.b16 %v383
          %v403 = vunpack.c.l.b16 %v384
          %v404 = vunpack.c.l.b16 %v385
          %v405 = vpack.c.b16 %v402, %v401
          %v406 = vpack.c.b16 %v404, %v403
          %v411 = vunpack.c.l.b16 %v386
          %v412 = vunpack.c.l.b16 %v387
          %v413 = vunpack.c.l.b16 %v388
          %v414 = vunpack.c.l.b16 %v389
          %v415 = vpack.c.b16 %v412, %v411
          %v416 = vpack.c.b16 %v414, %v413
          %vm419 = vcmask 261120
          %v421 = vsel %vm419, %v405, 0
          %v424 = vsel %vm419, %v406, 0
          %426 = vmatprep.subr.bf16.mxu0 0
          %427 = vmatpush1.bf16.msra.mxu0 0
          %428 = vmatprep.subr.bf16.mxu0 0
          %429 = vmatpush1.bf16.msra.mxu0 0
          %430 = vmatprep.subr.bf16.mxu0 0
          %431 = vmatpush1.bf16.msra.mxu0 0
          %432 = vmatprep.subr.bf16.mxu0 0
          %433 = vmatpush1.bf16.msra.mxu0 0
          %434 = vmatprep.subr.bf16.mxu0 0
          %435 = vmatpush1.bf16.msra.mxu0 0
          %436 = vmatprep.subr.bf16.mxu0 0
          %437 = vmatpush1.bf16.msra.mxu0 0
          %438 = vmatprep.subr.bf16.mxu0 0
          %439 = vmatpush1.bf16.msra.mxu0 %v416
          %440 = vmatprep.subr.bf16.mxu0 0
          %441 = vmatpush1.bf16.msra.mxu0 %v415
          %442 = vmatprep.subr.bf16.mxu0 0
          %443 = vmatpush2.bf16.msra.mxu0 0
          %444 = vmatprep.subr.bf16.mxu0 0
          %445 = vmatpush2.bf16.msra.mxu0 0
          %446 = vmatprep.subr.bf16.mxu0 0
          %447 = vmatpush2.bf16.msra.mxu0 0
          %448 = vmatprep.subr.bf16.mxu0 0
          %449 = vmatpush2.bf16.msra.mxu0 0
          %450 = vmatprep.subr.bf16.mxu0 0
          %451 = vmatpush2.bf16.msra.mxu0 0
          %452 = vmatprep.subr.bf16.mxu0 0
          %453 = vmatpush2.bf16.msra.mxu0 0
          %454 = vmatprep.subr.bf16.mxu0 0
          %455 = vmatpush2.bf16.msra.mxu0 0
          %456 = vmatprep.subr.bf16.mxu0 0
          %457 = vmatpush2.bf16.msra.mxu0 0
          %458 = vmatprep.mubr.bf16.mxu0 0
          %459 = vmatmul.mubr.bf16.gmra.mxu0 %v421
          %v460 = vpop.f32.mrf.mxu0
          %v461 = vadd.f32 %v395, %v460
          %v462 = vpop.f32.mrf.mxu0
          %v463 = vpop.f32.mrf.mxu0
          %v464 = vadd.f32 %v395, %v463
          %v465 = vpop.f32.mrf.mxu0
          %466 = vmatprep.mubr.bf16.mxu0 0
          %467 = vmatmul.mubr.bf16.gmra.mxu0 %v424
          %v468 = vpop.f32.mrf.mxu0
          %v469 = vadd.f32 %v395, %v468
          %v470 = vpop.f32.mrf.mxu0
          %v471 = vpop.f32.mrf.mxu0
          %v472 = vadd.f32 %v395, %v471
          %v473 = vpop.f32.mrf.mxu0
          %474 = vdwg.mxu0
          %v475 = vxor.u32 %v461, 2147483648
          %v476 = vxor.u32 %v464, 2147483648
          %v477 = vxor.u32 %v469, 2147483648
          %v478 = vxor.u32 %v472, 2147483648
          %v479 = vmul.f32 %v475, 1.442695
          %v480 = vpow.pop %v479
          %v481 = vmul.f32 %v476, 1.442695
          %v482 = vpow.pop %v481
          %v483 = vmul.f32 %v477, 1.442695
          %v484 = vpow.pop %v483
          %v485 = vmul.f32 %v478, 1.442695
          %v486 = vpow.pop %v485
          %v487 = vadd.f32 %v480, 1.0
          %v488 = vadd.f32 %v482, 1.0
          %v489 = vadd.f32 %v484, 1.0
          %v490 = vadd.f32 %v486, 1.0
          %v491 = vrcp.pop %v487
          %v492 = vmul.f32 1.0, %v491
          %v493 = vrcp.pop %v488
          %v494 = vmul.f32 1.0, %v493
          %v495 = vrcp.pop %v489
          %v496 = vmul.f32 1.0, %v495
          %v497 = vrcp.pop %v490
          %v498 = vmul.f32 1.0, %v497
          %v499 = vtanh.pop %v461
          %v500 = vtanh.pop %v464
          %v501 = vtanh.pop %v469
          %v502 = vtanh.pop %v472
          %507 = vrot.lane.b32.xlu0 %v499, 64
          %v508 = vpop.permute.xlu0 %507
          %509 = vrot.lane.b32.xlu0 %v500, 64
          %v510 = vpop.permute.xlu0 %509
          %511 = vrot.lane.b32.xlu0 %v501, 64
          %v512 = vpop.permute.xlu0 %511
          %513 = vrot.lane.b32.xlu0 %v502, 64
          %v514 = vpop.permute.xlu0 %513
          %v519 = vmul.f32 %v492, %v508
          %v520 = vmul.f32 %v494, %v510
          %v521 = vmul.f32 %v496, %v512
          %v522 = vmul.f32 %v498, %v514
          %v523 = vtanh.pop %v519
          %v524 = vtanh.pop %v520
          %v525 = vtanh.pop %v521
          %v526 = vtanh.pop %v522
          %531 = vrot.lane.b32.xlu0 %v523, 32
          %v532 = vpop.permute.xlu0 %531
          %533 = vrot.lane.b32.xlu0 %v524, 32
          %v534 = vpop.permute.xlu0 %533
          %535 = vrot.lane.b32.xlu0 %v525, 32
          %v536 = vpop.permute.xlu0 %535
          %537 = vrot.lane.b32.xlu0 %v526, 32
          %v538 = vpop.permute.xlu0 %537
          %v543 = vmul.f32 %v492, %v532
          %v544 = vmul.f32 %v494, %v534
          %v545 = vmul.f32 %v496, %v536
          %v546 = vmul.f32 %v498, %v538
          %551 = vrot.lane.b32.xlu0 %v543, 96
          %v552 = vpop.permute.xlu0 %551
          %553 = vrot.lane.b32.xlu0 %v544, 96
          %v554 = vpop.permute.xlu0 %553
          %555 = vrot.lane.b32.xlu0 %v545, 96
          %v556 = vpop.permute.xlu0 %555
          %557 = vrot.lane.b32.xlu0 %v546, 96
          %v558 = vpop.permute.xlu0 %557
          %567 = vrot.lane.b32.xlu0 %v519, 32
          %v568 = vpop.permute.xlu0 %567
          %569 = vrot.lane.b32.xlu0 %v520, 32
          %v570 = vpop.permute.xlu0 %569
          %571 = vrot.lane.b32.xlu0 %v521, 32
          %v572 = vpop.permute.xlu0 %571
          %573 = vrot.lane.b32.xlu0 %v522, 32
          %v574 = vpop.permute.xlu0 %573
          %v579 = vsel %vm419, %v552, %v568
          %v580 = vsel %vm419, %v554, %v570
          %v581 = vsel %vm419, %v556, %v572
          %v582 = vsel %vm419, %v558, %v574
          %583 = vst.msk [vmem:[#allocation2] sm:$0xff] %vm371, %v579
          %584 = vst.msk [vmem:[#allocation2 + $0x8] sm:$0xff] %vm371, %v580
          %585 = vst.msk [vmem:[#allocation2 + $0x10] sm:$0xff] %vm371, %v581
          %586 = vst.msk [vmem:[#allocation2 + $0x18] sm:$0xff] %vm371, %v582
        $region80: #{tpu_custom_call.1} parent=55 // pred_fallthru
          _
        %s587 = sadd.s32 %s24, 1
        %s588 = smul.u32 %s587, 16
        %s589 = scalar_select %p367, 0, %s588
        %s590 = scalar_lea.vmem [#allocation2], %s589
        %v591 = vld [vmem:[%s590] sm:$0xff]
        %v592 = vld [vmem:[%s590 + $0x8] sm:$0xff]
        %v593 = vld [vmem:[%s590 + $0x10] sm:$0xff]
        %v594 = vld [vmem:[%s590 + $0x18] sm:$0xff]
        %v595 = vpack.c.bf16 %v592, %v591
        %v596 = vpack.c.bf16 %v594, %v593
        %v597 = vld [vmem:[%s7] sm:$0xf]
        %v598 = vld [vmem:[%s7 + $0x4] sm:$0xf]
        %v599 = vld [vmem:[%s8] sm:$0xf]
        %v600 = vld [vmem:[%s8 + $0x4] sm:$0xf]
        %v603 = vunpack.c.l.b16 %v597
        %v604 = vunpack.c.l.b16 %v598
        %v605 = vpack.c.b16 %v604, %v603
        %vm606 = vcmask 261120
        %v608 = vsel %vm606, %v605, 0
        %610 = vmatprep.subr.bf16.mxu0 0
        %611 = vmatpush1.bf16.msra.mxu0 0
        %612 = vmatprep.subr.bf16.mxu0 0
        %613 = vmatpush1.bf16.msra.mxu0 0
        %614 = vmatprep.subr.bf16.mxu0 0
        %615 = vmatpush1.bf16.msra.mxu0 0
        %616 = vmatprep.subr.bf16.mxu0 0
        %617 = vmatpush1.bf16.msra.mxu0 0
        %618 = vmatprep.subr.bf16.mxu0 0
        %619 = vmatpush1.bf16.msra.mxu0 0
        %620 = vmatprep.subr.bf16.mxu0 0
        %621 = vmatpush1.bf16.msra.mxu0 0
        %622 = vmatprep.subr.bf16.mxu0 0
        %623 = vmatpush1.bf16.msra.mxu0 %v596
        %624 = vmatprep.subr.bf16.mxu0 0
        %625 = vmatpush1.bf16.msra.mxu0 %v595
        %626 = vmatprep.subr.bf16.mxu0 0
        %627 = vmatpush2.bf16.msra.mxu0 0
        %628 = vmatprep.subr.bf16.mxu0 0
        %629 = vmatpush2.bf16.msra.mxu0 0
        %630 = vmatprep.subr.bf16.mxu0 0
        %631 = vmatpush2.bf16.msra.mxu0 0
        %632 = vmatprep.subr.bf16.mxu0 0
        %633 = vmatpush2.bf16.msra.mxu0 0
        %634 = vmatprep.subr.bf16.mxu0 0
        %635 = vmatpush2.bf16.msra.mxu0 0
        %636 = vmatprep.subr.bf16.mxu0 0
        %637 = vmatpush2.bf16.msra.mxu0 0
        %638 = vmatprep.subr.bf16.mxu0 0
        %639 = vmatpush2.bf16.msra.mxu0 0
        %640 = vmatprep.subr.bf16.mxu0 0
        %641 = vmatpush2.bf16.msra.mxu0 0
        %642 = vmatprep.mubr.bf16.mxu0 0
        %643 = vmatmul.mubr.bf16.gmra.mxu0 %v608
        %v644 = vpop.f32.mrf.mxu0
        %v645 = vadd.f32 0.0, %v644
        %v646 = vpop.f32.mrf.mxu0
        %v647 = vpop.f32.mrf.mxu0
        %v648 = vadd.f32 0.0, %v647
        %v649 = vpop.f32.mrf.mxu0
        %650 = vdwg.mxu0
        %v653 = vunpack.c.l.b16 %v599
        %v654 = vunpack.c.l.b16 %v600
        %v655 = vpack.c.b16 %v654, %v653
        %v657 = vsel %vm606, %v655, 0
        %659 = vmatprep.subr.bf16.mxu0 0
        %660 = vmatpush1.bf16.msra.mxu0 0
        %661 = vmatprep.subr.bf16.mxu0 0
        %662 = vmatpush1.bf16.msra.mxu0 0
        %663 = vmatprep.subr.bf16.mxu0 0
        %664 = vmatpush1.bf16.msra.mxu0 0
        %665 = vmatprep.subr.bf16.mxu0 0
        %666 = vmatpush1.bf16.msra.mxu0 0
        %667 = vmatprep.subr.bf16.mxu0 0
        %668 = vmatpush1.bf16.msra.mxu0 0
        %669 = vmatprep.subr.bf16.mxu0 0
        %670 = vmatpush1.bf16.msra.mxu0 0
        %671 = vmatprep.subr.bf16.mxu0 0
        %672 = vmatpush1.bf16.msra.mxu0 %v596
        %673 = vmatprep.subr.bf16.mxu0 0
        %674 = vmatpush1.bf16.msra.mxu0 %v595
        %675 = vmatprep.subr.bf16.mxu0 0
        %676 = vmatpush2.bf16.msra.mxu0 0
        %677 = vmatprep.subr.bf16.mxu0 0
        %678 = vmatpush2.bf16.msra.mxu0 0
        %679 = vmatprep.subr.bf16.mxu0 0
        %680 = vmatpush2.bf16.msra.mxu0 0
        %681 = vmatprep.subr.bf16.mxu0 0
        %682 = vmatpush2.bf16.msra.mxu0 0
        %683 = vmatprep.subr.bf16.mxu0 0
        %684 = vmatpush2.bf16.msra.mxu0 0
        %685 = vmatprep.subr.bf16.mxu0 0
        %686 = vmatpush2.bf16.msra.mxu0 0
        %687 = vmatprep.subr.bf16.mxu0 0
        %688 = vmatpush2.bf16.msra.mxu0 0
        %689 = vmatprep.subr.bf16.mxu0 0
        %690 = vmatpush2.bf16.msra.mxu0 0
        %691 = vmatprep.mubr.bf16.mxu0 0
        %692 = vmatmul.mubr.bf16.gmra.mxu0 %v657
        %v693 = vpop.f32.mrf.mxu0
        %v694 = vadd.f32 0.0, %v693
        %v695 = vpop.f32.mrf.mxu0
        %v696 = vpop.f32.mrf.mxu0
        %v697 = vadd.f32 0.0, %v696
        %v698 = vpop.f32.mrf.mxu0
        %699 = vdwg.mxu0
        %v700 = vunpack.c.l.bf16 %v597
        %v701 = vunpack.c.l.bf16 %v598
        %706 = vrot.lane.b32.xlu0 %v591, 96
        %v707 = vpop.permute.xlu0 %706
        %708 = vrot.lane.b32.xlu0 %v592, 96
        %v709 = vpop.permute.xlu0 %708
        %710 = vrot.lane.b32.xlu0 %v593, 96
        %v711 = vpop.permute.xlu0 %710
        %712 = vrot.lane.b32.xlu0 %v594, 96
        %v713 = vpop.permute.xlu0 %712
        %v719 = vsel %vm606, %v700, 0
        %v722 = vsel %vm606, %v701, 0
        %724 = vmatprep.subr.mxu0 0.0
        %725 = vmatpush1.msra.mxu0 0.0
        %726 = vmatprep.subr.mxu0 0.0
        %727 = vmatpush1.msra.mxu0 0.0
        %728 = vmatprep.subr.mxu0 0.0
        %729 = vmatpush1.msra.mxu0 0.0
        %730 = vmatprep.subr.mxu0 0.0
        %731 = vmatpush1.msra.mxu0 0.0
        %732 = vmatprep.subr.mxu0 0.0
        %733 = vmatpush1.msra.mxu0 0.0
        %734 = vmatprep.subr.mxu0 0.0
        %735 = vmatpush1.msra.mxu0 0.0
        %736 = vmatprep.subr.mxu0 0.0
        %737 = vmatpush1.msra.mxu0 0.0
        %738 = vmatprep.subr.mxu0 0.0
        %739 = vmatpush1.msra.mxu0 0.0
        %740 = vmatprep.subr.mxu0 0.0
        %741 = vmatpush1.msra.mxu0 0.0
        %742 = vmatprep.subr.mxu0 0.0
        %743 = vmatpush1.msra.mxu0 0.0
        %744 = vmatprep.subr.mxu0 0.0
        %745 = vmatpush1.msra.mxu0 0.0
        %746 = vmatprep.subr.mxu0 0.0
        %747 = vmatpush1.msra.mxu0 0.0
        %748 = vmatprep.subr.mxu0 0.0
        %749 = vmatpush1.msra.mxu0 %v713
        %750 = vmatprep.subr.mxu0 0.0
        %751 = vmatpush1.msra.mxu0 %v711
        %752 = vmatprep.subr.mxu0 0.0
        %753 = vmatpush1.msra.mxu0 %v709
        %754 = vmatprep.subr.mxu0 0.0
        %755 = vmatpush1.msra.mxu0 %v707
        %756 = vmatprep.subr.mxu0 0.0
        %757 = vmatpush2.msra.mxu0 0.0
        %758 = vmatprep.subr.mxu0 0.0
        %759 = vmatpush2.msra.mxu0 0.0
        %760 = vmatprep.subr.mxu0 0.0
        %761 = vmatpush2.msra.mxu0 0.0
        %762 = vmatprep.subr.mxu0 0.0
        %763 = vmatpush2.msra.mxu0 0.0
        %764 = vmatprep.subr.mxu0 0.0
        %765 = vmatpush2.msra.mxu0 0.0
        %766 = vmatprep.subr.mxu0 0.0
        %767 = vmatpush2.msra.mxu0 0.0
        %768 = vmatprep.subr.mxu0 0.0
        %769 = vmatpush2.msra.mxu0 0.0
        %770 = vmatprep.subr.mxu0 0.0
        %771 = vmatpush2.msra.mxu0 0.0
        %772 = vmatprep.subr.mxu0 0.0
        %773 = vmatpush2.msra.mxu0 0.0
        %774 = vmatprep.subr.mxu0 0.0
        %775 = vmatpush2.msra.mxu0 0.0
        %776 = vmatprep.subr.mxu0 0.0
        %777 = vmatpush2.msra.mxu0 0.0
        %778 = vmatprep.subr.mxu0 0.0
        %779 = vmatpush2.msra.mxu0 0.0
        %780 = vmatprep.subr.mxu0 0.0
        %781 = vmatpush2.msra.mxu0 0.0
        %782 = vmatprep.subr.mxu0 0.0
        %783 = vmatpush2.msra.mxu0 0.0
        %784 = vmatprep.subr.mxu0 0.0
        %785 = vmatpush2.msra.mxu0 0.0
        %786 = vmatprep.subr.mxu0 0.0
        %787 = vmatpush2.msra.mxu0 0.0
        %788 = vmatprep.mubr.f32.mxu0 0.0
        %789 = vmatmul.mubr.f32.gmra.mxu0 %v719
        %v790 = vpop.f32.mrf.mxu0
        %v791 = vadd.f32 0.0, %v790
        %v792 = vpop.f32.mrf.mxu0
        %793 = vmatprep.mubr.f32.mxu0 0.0
        %794 = vmatmul.mubr.f32.gmra.mxu0 %v722
        %v795 = vpop.f32.mrf.mxu0
        %v796 = vadd.f32 0.0, %v795
        %v797 = vpop.f32.mrf.mxu0
        %798 = vdwg.mxu0
        %v799 = vunpack.c.l.bf16 %v599
        %v800 = vunpack.c.l.bf16 %v600
        %v802 = vsel %vm606, %v799, 0
        %v805 = vsel %vm606, %v800, 0
        %807 = vmatprep.subr.mxu0 0.0
        %808 = vmatpush1.msra.mxu0 0.0
        %809 = vmatprep.subr.mxu0 0.0
        %810 = vmatpush1.msra.mxu0 0.0
        %811 = vmatprep.subr.mxu0 0.0
        %812 = vmatpush1.msra.mxu0 0.0
        %813 = vmatprep.subr.mxu0 0.0
        %814 = vmatpush1.msra.mxu0 0.0
        %815 = vmatprep.subr.mxu0 0.0
        %816 = vmatpush1.msra.mxu0 0.0
        %817 = vmatprep.subr.mxu0 0.0
        %818 = vmatpush1.msra.mxu0 0.0
        %819 = vmatprep.subr.mxu0 0.0
        %820 = vmatpush1.msra.mxu0 0.0
        %821 = vmatprep.subr.mxu0 0.0
        %822 = vmatpush1.msra.mxu0 0.0
        %823 = vmatprep.subr.mxu0 0.0
        %824 = vmatpush1.msra.mxu0 0.0
        %825 = vmatprep.subr.mxu0 0.0
        %826 = vmatpush1.msra.mxu0 0.0
        %827 = vmatprep.subr.mxu0 0.0
        %828 = vmatpush1.msra.mxu0 0.0
        %829 = vmatprep.subr.mxu0 0.0
        %830 = vmatpush1.msra.mxu0 0.0
        %831 = vmatprep.subr.mxu0 0.0
        %832 = vmatpush1.msra.mxu0 %v713
        %833 = vmatprep.subr.mxu0 0.0
        %834 = vmatpush1.msra.mxu0 %v711
        %835 = vmatprep.subr.mxu0 0.0
        %836 = vmatpush1.msra.mxu0 %v709
        %837 = vmatprep.subr.mxu0 0.0
        %838 = vmatpush1.msra.mxu0 %v707
        %839 = vmatprep.subr.mxu0 0.0
        %840 = vmatpush2.msra.mxu0 0.0
        %841 = vmatprep.subr.mxu0 0.0
        %842 = vmatpush2.msra.mxu0 0.0
        %843 = vmatprep.subr.mxu0 0.0
        %844 = vmatpush2.msra.mxu0 0.0
        %845 = vmatprep.subr.mxu0 0.0
        %846 = vmatpush2.msra.mxu0 0.0
        %847 = vmatprep.subr.mxu0 0.0
        %848 = vmatpush2.msra.mxu0 0.0
        %849 = vmatprep.subr.mxu0 0.0
        %850 = vmatpush2.msra.mxu0 0.0
        %851 = vmatprep.subr.mxu0 0.0
        %852 = vmatpush2.msra.mxu0 0.0
        %853 = vmatprep.subr.mxu0 0.0
        %854 = vmatpush2.msra.mxu0 0.0
        %855 = vmatprep.subr.mxu0 0.0
        %856 = vmatpush2.msra.mxu0 0.0
        %857 = vmatprep.subr.mxu0 0.0
        %858 = vmatpush2.msra.mxu0 0.0
        %859 = vmatprep.subr.mxu0 0.0
        %860 = vmatpush2.msra.mxu0 0.0
        %861 = vmatprep.subr.mxu0 0.0
        %862 = vmatpush2.msra.mxu0 0.0
        %863 = vmatprep.subr.mxu0 0.0
        %864 = vmatpush2.msra.mxu0 0.0
        %865 = vmatprep.subr.mxu0 0.0
        %866 = vmatpush2.msra.mxu0 0.0
        %867 = vmatprep.subr.mxu0 0.0
        %868 = vmatpush2.msra.mxu0 0.0
        %869 = vmatprep.subr.mxu0 0.0
        %870 = vmatpush2.msra.mxu0 0.0
        %871 = vmatprep.mubr.f32.mxu0 0.0
        %872 = vmatmul.mubr.f32.gmra.mxu0 %v802
        %v873 = vpop.f32.mrf.mxu0
        %v874 = vadd.f32 0.0, %v873
        %v875 = vpop.f32.mrf.mxu0
        %876 = vmatprep.mubr.f32.mxu0 0.0
        %877 = vmatmul.mubr.f32.gmra.mxu0 %v805
        %v878 = vpop.f32.mrf.mxu0
        %v879 = vadd.f32 0.0, %v878
        %v880 = vpop.f32.mrf.mxu0
        %881 = vdwg.mxu0
        %884 = vrot.lane.b32.xlu0 %v694, 32
        %v885 = vpop.permute.xlu0 %884
        %886 = vrot.lane.b32.xlu0 %v697, 32
        %v887 = vpop.permute.xlu0 %886
        %v890 = vsel %vm606, %v645, %v885
        %v891 = vsel %vm606, %v648, %v887
        %v892 = vpack.c.bf16 %v891, %v890
        %v893 = vld [vmem:[#allocation8] sm:$0xff]
        %v894 = vld [vmem:[#allocation8 + $0x8] sm:$0xff]
        %v895 = vld [vmem:[#allocation8 + $0x10] sm:$0xff]
        %v896 = vld [vmem:[#allocation8 + $0x18] sm:$0xff]
        %v897 = vld [vmem:[#allocation8 + $0x20] sm:$0xff]
        %v898 = vld [vmem:[#allocation8 + $0x28] sm:$0xff]
        %v899 = vld [vmem:[#allocation8 + $0x30] sm:$0xff]
        %v900 = vld [vmem:[#allocation8 + $0x38] sm:$0xff]
        %v901 = vld [vmem:[#allocation9] sm:$0x3]
        %v903 = vlaneseq
        %v904 = vshrl.u32 %v903, 7
        %v905 = vsub.s32 0, %v904
        %v906 = vrot.slane %v901, %v905
        %v907 = vlaneseq
        %v908 = vshrl.u32 %v907, 7
        %v909 = vsub.s32 1, %v908
        %v910 = vrot.slane %v901, %v909
        %v921 = vunpack.c.l.b16 %v893
        %v922 = vunpack.c.h.b16 %v893
        %v923 = vunpack.c.l.b16 %v894
        %v924 = vunpack.c.h.b16 %v894
        %v925 = vunpack.c.l.b16 %v895
        %v926 = vunpack.c.h.b16 %v895
        %v927 = vunpack.c.l.b16 %v896
        %v928 = vunpack.c.h.b16 %v896
        %v929 = vunpack.c.l.b16 %v897
        %v930 = vunpack.c.h.b16 %v897
        %v931 = vunpack.c.l.b16 %v898
        %v932 = vunpack.c.h.b16 %v898
        %v933 = vunpack.c.l.b16 %v899
        %v934 = vunpack.c.h.b16 %v899
        %v935 = vunpack.c.l.b16 %v900
        %v936 = vunpack.c.h.b16 %v900
        %v937 = vpack.c.b16 %v923, %v921
        %v938 = vpack.c.b16 %v924, %v922
        %v939 = vpack.c.b16 %v927, %v925
        %v940 = vpack.c.b16 %v928, %v926
        %v941 = vpack.c.b16 %v931, %v929
        %v942 = vpack.c.b16 %v932, %v930
        %v943 = vpack.c.b16 %v935, %v933
        %v944 = vpack.c.b16 %v936, %v934
        %vm953 = vcmask 523264
        %v955 = vsel %vm953, %v892, 0
        %957 = vmatprep.subr.bf16.mxu0 0
        %958 = vmatpush1.bf16.msra.mxu0 0
        %959 = vmatprep.subr.bf16.mxu0 0
        %960 = vmatpush1.bf16.msra.mxu0 0
        %961 = vmatprep.subr.bf16.mxu0 0
        %962 = vmatpush1.bf16.msra.mxu0 0
        %963 = vmatprep.subr.bf16.mxu0 0
        %964 = vmatpush1.bf16.msra.mxu0 0
        %965 = vmatprep.subr.bf16.mxu0 %v944
        %966 = vmatpush1.bf16.msra.mxu0 %v943
        %967 = vmatprep.subr.bf16.mxu0 %v942
        %968 = vmatpush1.bf16.msra.mxu0 %v941
        %969 = vmatprep.subr.bf16.mxu0 %v940
        %970 = vmatpush1.bf16.msra.mxu0 %v939
        %971 = vmatprep.subr.bf16.mxu0 %v938
        %972 = vmatpush1.bf16.msra.mxu0 %v937
        %973 = vmatprep.subr.bf16.mxu0 0
        %974 = vmatpush2.bf16.msra.mxu0 0
        %975 = vmatprep.subr.bf16.mxu0 0
        %976 = vmatpush2.bf16.msra.mxu0 0
        %977 = vmatprep.subr.bf16.mxu0 0
        %978 = vmatpush2.bf16.msra.mxu0 0
        %979 = vmatprep.subr.bf16.mxu0 0
        %980 = vmatpush2.bf16.msra.mxu0 0
        %981 = vmatprep.subr.bf16.mxu0 0
        %982 = vmatpush2.bf16.msra.mxu0 0
        %983 = vmatprep.subr.bf16.mxu0 0
        %984 = vmatpush2.bf16.msra.mxu0 0
        %985 = vmatprep.subr.bf16.mxu0 0
        %986 = vmatpush2.bf16.msra.mxu0 0
        %987 = vmatprep.subr.bf16.mxu0 0
        %988 = vmatpush2.bf16.msra.mxu0 0
        %989 = vmatprep.mubr.bf16.mxu0 0
        %990 = vmatmul.mubr.bf16.gmra.mxu0 %v955
        %v991 = vpop.f32.mrf.mxu0
        %v992 = vadd.f32 %v906, %v991
        %v993 = vpop.f32.mrf.mxu0
        %v994 = vadd.f32 %v910, %v993
        %v995 = vpop.f32.mrf.mxu0
        %v996 = vadd.f32 %v906, %v995
        %v997 = vpop.f32.mrf.mxu0
        %v998 = vadd.f32 %v910, %v997
        %999 = vdwg.mxu0
        %v1000 = vxor.u32 %v992, 2147483648
        %v1001 = vxor.u32 %v996, 2147483648
        %v1002 = vmul.f32 %v1000, 1.442695
        %v1003 = vpow.pop %v1002
        %v1004 = vmul.f32 %v1001, 1.442695
        %v1005 = vpow.pop %v1004
        %v1006 = vadd.f32 %v1003, 1.0
        %v1007 = vadd.f32 %v1005, 1.0
        %v1008 = vrcp.pop %v1006
        %v1009 = vmul.f32 1.0, %v1008
        %v1010 = vrcp.pop %v1007
        %v1011 = vmul.f32 1.0, %v1010
        %v1012 = vtanh.pop %v994
        %v1013 = vtanh.pop %v998
        %1016 = vrot.lane.b32.xlu0 %v1012, 64
        %v1017 = vpop.permute.xlu0 %1016
        %1018 = vrot.lane.b32.xlu0 %v1013, 64
        %v1019 = vpop.permute.xlu0 %1018
        %v1022 = vmul.f32 %v1009, %v1017
        %v1023 = vmul.f32 %v1011, %v1019
        %v1024 = vmul.f32 %v1009, %v791
        %v1025 = vmul.f32 %v1011, %v796
        %1028 = vrot.lane.b32.xlu0 %v1024, 64
        %v1029 = vpop.permute.xlu0 %1028
        %1030 = vrot.lane.b32.xlu0 %v1025, 64
        %v1031 = vpop.permute.xlu0 %1030
        %v1034 = vadd.f32 %v1022, %v1029
        %v1035 = vadd.f32 %v1023, %v1031
        %1038 = vrot.lane.b32.xlu0 %v874, 32
        %v1039 = vpop.permute.xlu0 %1038
        %1040 = vrot.lane.b32.xlu0 %v879, 32
        %v1041 = vpop.permute.xlu0 %1040
        %v1044 = vmul.f32 %v1009, %v1039
        %v1045 = vmul.f32 %v1011, %v1041
        %1048 = vrot.lane.b32.xlu0 %v1044, 32
        %v1049 = vpop.permute.xlu0 %1048
        %1050 = vrot.lane.b32.xlu0 %v1045, 32
        %v1051 = vpop.permute.xlu0 %1050
        %v1054 = vadd.f32 %v1034, %v1049
        %v1055 = vadd.f32 %v1035, %v1051
        %v1056 = vtanh.pop %v1054
        %v1057 = vtanh.pop %v1055
        %1060 = vrot.lane.b32.xlu0 %v1056, 32
        %v1061 = vpop.permute.xlu0 %1060
        %1062 = vrot.lane.b32.xlu0 %v1057, 32
        %v1063 = vpop.permute.xlu0 %1062
        %v1066 = vmul.f32 %v1009, %v1061
        %v1067 = vmul.f32 %v1011, %v1063
        %s1068 = sadd.s32 %s24, 2
        %s1069 = smul.u32 %s1068, 16
        %1072 = vrot.lane.b32.xlu0 %v1066, 32
        %v1073 = vpop.permute.xlu0 %1072
        %1074 = vrot.lane.b32.xlu0 %v1067, 32
        %v1075 = vpop.permute.xlu0 %1074
        %1080 = vrot.lane.b32.xlu0 %v1054, 96
        %v1081 = vpop.permute.xlu0 %1080
        %1082 = vrot.lane.b32.xlu0 %v1055, 96
        %v1083 = vpop.permute.xlu0 %1082
        %v1086 = vsel %vm606, %v1073, %v1081
        %v1087 = vsel %vm606, %v1075, %v1083
        %s1088 = scalar_lea.vmem [#allocation2], %s1069
        %1089 = vst.msk [vmem:[%s1088] sm:$0xff] %vm953, %v1086
        %1090 = vst.msk [vmem:[%s1088 + $0x8] sm:$0xff] %vm953, %v1087
        %p1091 = scmp.eq.s32.totalorder %s24, 2
        // Predicated region
        $region81: #{tpu_custom_call.1} parent=55 // pred_check
          %p1092 = pneg %p1091
        $region82: #{tpu_custom_call.1} parent=55 // pred_check_branch
          %1094 = sbr.rel (%p1092) target = $region84
        $region83: #{tpu_custom_call.1} parent=55 // pred_region
          %v1095 = vld [vmem:[#allocation2 + $0x40] sm:$0xff]
          %v1096 = vpack.c.bf16 %v1095, %v1095
          %v1097 = vld [vmem:[%s5] sm:$0xf]
          %v1098 = vld [vmem:[%s5 + $0x4] sm:$0xf]
          %v1099 = vld [vmem:[%s5 + $0x8] sm:$0xf]
          %v1100 = vld [vmem:[%s5 + $0xc] sm:$0xf]
          %v1101 = vld [vmem:[#allocation11] sm:$0x1]
          %v1103 = vlaneseq
          %v1104 = vshrl.u32 %v1103, 7
          %v1105 = vsub.s32 0, %v1104
          %v1106 = vrot.slane %v1101, %v1105
          %v1112 = vunpack.c.l.b16 %v1097
          %v1113 = vunpack.c.l.b16 %v1098
          %v1114 = vunpack.c.l.b16 %v1099
          %v1115 = vunpack.c.l.b16 %v1100
          %v1116 = vpack.c.b16 %v1113, %v1112
          %v1117 = vpack.c.b16 %v1115, %v1114
          %v1121 = vsel %vm606, %v1096, 0
          %1123 = vmatprep.subr.bf16.mxu0 0
          %1124 = vmatpush1.bf16.msra.mxu0 0
          %1125 = vmatprep.subr.bf16.mxu0 0
          %1126 = vmatpush1.bf16.msra.mxu0 0
          %1127 = vmatprep.subr.bf16.mxu0 0
          %1128 = vmatpush1.bf16.msra.mxu0 0
          %1129 = vmatprep.subr.bf16.mxu0 0
          %1130 = vmatpush1.bf16.msra.mxu0 0
          %1131 = vmatprep.subr.bf16.mxu0 0
          %1132 = vmatpush1.bf16.msra.mxu0 0
          %1133 = vmatprep.subr.bf16.mxu0 0
          %1134 = vmatpush1.bf16.msra.mxu0 0
          %1135 = vmatprep.subr.bf16.mxu0 0
          %1136 = vmatpush1.bf16.msra.mxu0 %v1117
          %1137 = vmatprep.subr.bf16.mxu0 0
          %1138 = vmatpush1.bf16.msra.mxu0 %v1116
          %1139 = vmatprep.subr.bf16.mxu0 0
          %1140 = vmatpush2.bf16.msra.mxu0 0
          %1141 = vmatprep.subr.bf16.mxu0 0
          %1142 = vmatpush2.bf16.msra.mxu0 0
          %1143 = vmatprep.subr.bf16.mxu0 0
          %1144 = vmatpush2.bf16.msra.mxu0 0
          %1145 = vmatprep.subr.bf16.mxu0 0
          %1146 = vmatpush2.bf16.msra.mxu0 0
          %1147 = vmatprep.subr.bf16.mxu0 0
          %1148 = vmatpush2.bf16.msra.mxu0 0
          %1149 = vmatprep.subr.bf16.mxu0 0
          %1150 = vmatpush2.bf16.msra.mxu0 0
          %1151 = vmatprep.subr.bf16.mxu0 0
          %1152 = vmatpush2.bf16.msra.mxu0 0
          %1153 = vmatprep.subr.bf16.mxu0 0
          %1154 = vmatpush2.bf16.msra.mxu0 0
          %1155 = vmatprep.mubr.bf16.mxu0 0
          %1156 = vmatmul.mubr.bf16.gmra.mxu0 %v1121
          %v1157 = vpop.f32.mrf.mxu0
          %v1158 = vadd.f32 %v1106, %v1157
          %v1159 = vpop.f32.mrf.mxu0
          %v1160 = vpop.f32.mrf.mxu0
          %v1161 = vpop.f32.mrf.mxu0
          %1162 = vdwg.mxu0
          %vm1163 = vcmask 64512
          %v1164 = vsel %vm1163, %v1158, -inf
          %1165 = vmax.xlane.f32.xlu0 %v1164
          %v1166 = vpop.xlane.xlu0 %1165
          %v1167 = vsub.f32 %v1158, %v1166
          %v1168 = vmul.f32 %v1167, 1.442695
          %v1169 = vpow.pop %v1168
          %v1170 = vsel %vm1163, %v1169, 0.0
          %1171 = vadd.xlane.f32.xlu0 %v1170
          %v1172 = vpop.xlane.xlu0 %1171
          %v1173 = vlog2.pop %v1172
          %v1174 = vmul.f32 %v1173, 0.6931472
          %v1175 = vsub.f32 %v1167, %v1174
          %1176 = vst.msk [vmem:[#allocation12] sm:$0xff] %vm1163, %v1175
        $region84: #{tpu_custom_call.1} parent=55 // pred_fallthru
          _
        // Predicated region
        $region85: #{tpu_custom_call.1} parent=55 // pred_check
          %p1177 = pneg %p226
        $region86: #{tpu_custom_call.1} parent=55 // pred_check_branch
          %1179 = sbr.rel (%p1177) target = $region88
        $region87: #{tpu_custom_call.1} parent=55 // pred_region
          %s1181 = ssub.s32 128, 128
          %1182 = vsyncadd [#allocation5], %s1181
          %s1184 = sshll.u32 [#allocation12], 4
          %s1185 = int_to_ptr.vmem [resolvable:$true] %s1184
          %1187 = dma.vmem_to_hbm [thread:$0]  %s1185, 128, %s9, [#allocation5]
        $region88: #{tpu_custom_call.1} parent=55 // pred_fallthru
          _
        // Predicated region
        $region89: #{tpu_custom_call.1} parent=55 // pred_check
          %p1188 = pneg %p226
        $region90: #{tpu_custom_call.1} parent=55 // pred_check_branch
          %1190 = sbr.rel (%p1188) target = $region92
        $region91: #{tpu_custom_call.1} parent=55 // pred_region
          %1191 = dma.done [#allocation5], 128
        $region92: #{tpu_custom_call.1} parent=55 // pred_fallthru
          _
      $region56: #{tpu_custom_call.1} parent=5 // pred_fallthru
        _
      %p1192 = scmp.le.s32.totalorder 2, %s19
      // Predicated region
      $region93: #{tpu_custom_call.1} parent=5 // pred_check
        %p1193 = pneg %p1192
      $region94: #{tpu_custom_call.1} parent=5 // pred_check_branch
        %1195 = sbr.rel (%p1193) target = $region96
      $region95: #{tpu_custom_call.1} parent=5 // pred_region
        %s1196 = ssub.s32 %s19, 2
      $region96: #{tpu_custom_call.1} parent=5 // pred_fallthru
        _
    $region6: #{tpu_custom_call.1} parent=1 // loop_footer
      %s23 = sadd.s32 1, %s19
    $region7: #{tpu_custom_call.1} parent=1 // loop_footer_branch
      %18 = sbr.rel target = $region3
    $region8: #{tpu_custom_call.1} parent=1 // loop_exit
      _
    %1197 = vsyncpa [#allocation4], 1
    %s1198 = scalar_lea.sflag [#allocation4], 1
    %1199 = vsyncpa %s1198, 1
    %1200 = vsyncpa [#allocation7], 1
    %1201 = vsyncpa [#allocation10], 1
    %1202 = vsyncpa [#allocation5], 1
    %s1203 = scalar_lea.sflag [#allocation5], 1
    %1204 = vsyncpa %s1203, 1

</llo_original>
